<compile_context>
chip_gen: v7x
topology: tpu7x:2x2x1
jax: 0.10.0
libtpu: 0.0.40
codegen_flags: <defaults>
</compile_context>

<pallas_src>
import jax
import jax.numpy as jnp
from jax.experimental import pallas as pl
from jax.experimental.pallas import tpu as pltpu


# ----------------------------------------------------------------------------
# In-kernel helpers
# ----------------------------------------------------------------------------
def _im2col_conv_bn_relu(xpad, slab_ref, w_ref, scale_ref, bias_ref, k):
    # xpad:     (Hp, Wp, Cin) bf16   padded activations (value, already loaded)
    # slab_ref: (Ho*Wo, 288)  bf16   reusable im2col slab scratch (lanes [0:k*k*Cin) used)
    # w_ref:    (k*k*Cin, Cout) bf16 flattened conv weights, tap-major
    # scale/bias: (1, Cout) f32      folded BatchNorm affine
    hp, wp, cin = xpad.shape
    ho, wo = hp - (k - 1), wp - (k - 1)
    m = ho * wo
    # Build the slab directly in bf16 scratch (no concatenate, no f32 temporary).
    for t in range(k * k):
        ky, kx = t // k, t % k
        col = xpad[ky:ky + ho, kx:kx + wo, :].reshape(m, cin)
        slab_ref[:, t * cin:(t + 1) * cin] = col.astype(slab_ref.dtype)
    kdim = k * k * cin
    y = jnp.dot(slab_ref[:, 0:kdim], w_ref[...],
                preferred_element_type=jnp.float32)          # single fat-K MXU matmul
    return jnp.maximum(y * scale_ref[...] + bias_ref[...], 0.0)   # fused BN + ReLU (f32)


def _store_padded_act(dst_ref, y, ho, wo):
    # Write the (Ho*Wo, C) activation into the padded (Ho+2, Wo+2, C) scratch,
    # producing the zero border as part of the store (no separate buffer zero-fill):
    #   * interior rows get zero columns concatenated on both sides -> full-row stores
    #   * top / bottom border rows are two small full-row zero stores.
    c = dst_ref.shape[2]
    y3 = y.reshape(ho, wo, c).astype(dst_ref.dtype)
    zcol = jnp.zeros((ho, 1, c), dst_ref.dtype)
    dst_ref[1:ho + 1, :, :] = jnp.concatenate([zcol, y3, zcol], axis=1)
    zrow = jnp.zeros((1, wo + 2, c), dst_ref.dtype)
    dst_ref[0:1, :, :] = zrow
    dst_ref[ho + 1:ho + 2, :, :] = zrow


def stem_kernel(xs2d_ref, wa_ref, sa_ref, ba_ref, wb_ref, sb_ref, bb_ref,
                wc_ref, sc_ref, bc_ref, o_ref,
                acta_ref, actb_ref, actc_ref, slab_ref):
    ha = acta_ref.shape[0] - 2
    wa = acta_ref.shape[1] - 2
    cc = actc_ref.shape[2]
    hop, wop = o_ref.shape[1], o_ref.shape[2]

    # conv1[0] (3x3 / stride 2) expressed as a 2x2 / stride-1 conv on the
    # space-to-depth input, fused with conv1[1] (BN) and conv1[2] (ReLU).
    ya = _im2col_conv_bn_relu(xs2d_ref[0], slab_ref, wa_ref, sa_ref, ba_ref, k=2)
    _store_padded_act(acta_ref, ya, ha, wa)

    # conv1[3] (3x3 / stride 1) + BN + ReLU.
    yb = _im2col_conv_bn_relu(acta_ref[...], slab_ref, wb_ref, sb_ref, bb_ref, k=3)
    _store_padded_act(actb_ref, yb, ha, wa)

    # conv1[6] (3x3 / stride 1) + bn1 + act1.
    yc = _im2col_conv_bn_relu(actb_ref[...], slab_ref, wc_ref, sc_ref, bc_ref, k=3)
    _store_padded_act(actc_ref, yc, ha, wa)

    # MaxPool2d(kernel=3, stride=2, padding=1) -- VPU only, strided outputs only.
    # Valid to pool against the zero border ONLY because actc is post-ReLU (>= 0).
    # Columns: three stride-2 sublane reads directly from actc (taps {2c,2c+1,2c+2}).
    c0 = actc_ref[:, pl.ds(0, wop, stride=2), :]
    c1 = actc_ref[:, pl.ds(1, wop, stride=2), :]
    c2 = actc_ref[:, pl.ds(2, wop, stride=2), :]
    mw = jnp.maximum(jnp.maximum(c0, c1), c2)              # (ha+2, wop, cc)
    # Rows: (ha+2) is even -> free leading-dim reshape exposes even/odd rows; taps
    # {2r, 2r+1, 2r+2} become plain slices of that view.
    pr = mw.reshape((ha + 2) // 2, 2, wop, cc)
    o_ref[0] = jnp.maximum(jnp.maximum(pr[0:hop, 0], pr[0:hop, 1]), pr[1:hop + 1, 0])


# ----------------------------------------------------------------------------
# Wrapper (parameter folding, space-to-depth, pallas_call plumbing)
# ----------------------------------------------------------------------------
def fold_bn(gamma, beta, mean, var, eps=1e-5):
    scale = gamma / jnp.sqrt(var + eps)
    bias = beta - mean * scale
    return scale, bias


def _space_to_depth_weight(w_hwio):
    # Rewrite the 3x3 / stride-2 conv weight as an equivalent 2x2 / stride-1 conv
    # weight acting on the space-to-depth (factor 2) transform of the padded input.
    cin, cout = w_hwio.shape[2], w_hwio.shape[3]
    w2 = jnp.zeros((2, 2, 2, 2, cin, cout), w_hwio.dtype)   # (dy, dx, sy, sx, ci, co)
    for dy in range(2):
        for dx in range(2):
            for sy in range(2):
                for sx in range(2):
                    ky, kx = 2 * dy + sy, 2 * dx + sx
                    if ky < 3 and kx < 3:
                        w2 = w2.at[dy, dx, sy, sx].set(w_hwio[ky, kx])
    # row index = (dy*2+dx)*4*cin + (sy*2+sx)*cin + ci  (matches the kernel im2col)
    return w2.reshape(4 * 4 * cin, cout)


# TODO(synk): BatchNorm is implemented in inference mode (running statistics only);
# training-mode batch statistics are not reproduced.
def front_forward(params, x_nchw):
    n, cin, h, w = x_nchw.shape
    assert cin == 3 and h % 4 == 0 and w % 4 == 0, (cin, h, w)

    # NCHW -> NHWC, pad spatially by 1, then space-to-depth so the stride-2 conv
    # becomes a dense stride-1 2x2 conv with 12 input channels.  (The 12-wide minor
    # dim is lane-padded to 128 in VMEM; accepted -- conv_a is ~5% of the FLOPs.)
    x = jnp.transpose(x_nchw, (0, 2, 3, 1))
    xp = jnp.pad(x, ((0, 0), (1, 1), (1, 1), (0, 0)))
    hs, ws = (h + 2) // 2, (w + 2) // 2
    xs2d = xp.reshape(n, hs, 2, ws, 2, 3).transpose(0, 1, 3, 2, 4, 5).reshape(n, hs, ws, 12)
    xs2d = xs2d.astype(jnp.bfloat16)

    sa, ba = fold_bn(*params["bn_a"])
    sb, bb = fold_bn(*params["bn_b"])
    sc, bc = fold_bn(*params["bn1"])

    wa2 = _space_to_depth_weight(params["conv_a"]).astype(jnp.bfloat16)   # (48, 32)
    wb = params["conv_b"].reshape(9 * 32, 32).astype(jnp.bfloat16)        # (288, 32)
    wc = params["conv_c"].reshape(9 * 32, 64).astype(jnp.bfloat16)        # (288, 64)

    ha, wa = h // 2, w // 2          # conv-stage spatial size
    hop, wop = ha // 2, wa // 2      # maxpool output spatial size

    # ------- VMEM budget (computed, not hard-coded; minor dims pad to 128 lanes) ----
    lane_pad = lambda c: ((c + 127) // 128) * 128
    pad_pix = (ha + 2) * (wa + 2)
    scratch_bytes = (
        2 * pad_pix * lane_pad(32) * 2        # acta + actb (bf16)
        + pad_pix * lane_pad(64) * 4          # actc (f32)
        + (ha * wa) * lane_pad(288) * 2       # im2col slab (bf16)
    )
    io_block_bytes = (
        2 * hs * ws * lane_pad(12) * 2        # double-buffered space-to-depth input block
        + 2 * hop * wop * lane_pad(64) * 4    # double-buffered output block
    )
    vmem_budget = int(1.5 * (scratch_bytes + io_block_bytes)) + (4 << 20)
    vmem_budget = max(16 << 20, min(vmem_budget, 96 << 20))

    # ------- advisory cost estimate for the XLA scheduler ---------------------------
    m_pix = ha * wa
    flops = 2 * n * m_pix * (4 * 12 * 32 + 9 * 32 * 32 + 9 * 32 * 64)
    bytes_accessed = int(
        xs2d.size * 2 + (wa2.size + wb.size + wc.size) * 2
        + 4 * (sa.size + ba.size + sb.size + bb.size + sc.size + bc.size)
        + n * hop * wop * 64 * 4)
    cost = pl.CostEstimate(flops=flops, transcendentals=0, bytes_accessed=bytes_accessed)

    out = pl.pallas_call(
        stem_kernel,
        out_shape=jax.ShapeDtypeStruct((n, hop, wop, 64), jnp.float32),
        grid=(n,),
        in_specs=[
            pl.BlockSpec((1, hs, ws, 12), lambda i: (i, 0, 0, 0)),
            pl.BlockSpec((48, 32), lambda i: (0, 0)),
            pl.BlockSpec((1, 32), lambda i: (0, 0)),
            pl.BlockSpec((1, 32), lambda i: (0, 0)),
            pl.BlockSpec((288, 32), lambda i: (0, 0)),
            pl.BlockSpec((1, 32), lambda i: (0, 0)),
            pl.BlockSpec((1, 32), lambda i: (0, 0)),
            pl.BlockSpec((288, 64), lambda i: (0, 0)),
            pl.BlockSpec((1, 64), lambda i: (0, 0)),
            pl.BlockSpec((1, 64), lambda i: (0, 0)),
        ],
        out_specs=pl.BlockSpec((1, hop, wop, 64), lambda i: (i, 0, 0, 0)),
        scratch_shapes=[
            pltpu.VMEM((ha + 2, wa + 2, 32), jnp.bfloat16),   # act after conv_a (padded)
            pltpu.VMEM((ha + 2, wa + 2, 32), jnp.bfloat16),   # act after conv_b (padded)
            pltpu.VMEM((ha + 2, wa + 2, 64), jnp.float32),    # act after conv_c (padded)
            pltpu.VMEM((ha * wa, 288), jnp.bfloat16),         # reusable im2col slab
        ],
        compiler_params=pltpu.CompilerParams(
            dimension_semantics=("parallel",),
            vmem_limit_bytes=vmem_budget,
        ),
        cost_estimate=cost,
    )(xs2d, wa2, sa.reshape(1, 32), ba.reshape(1, 32),
      wb, sb.reshape(1, 32), bb.reshape(1, 32),
      wc, sc.reshape(1, 64), bc.reshape(1, 64))

    return jnp.transpose(out, (0, 3, 1, 2))                 # NHWC -> NCHW


# ----------------------------------------------------------------------------
# Deterministic synthetic parameters (shapes match the resnet50d deep stem)
# ----------------------------------------------------------------------------
def init_params(key):
    ks = jax.random.split(key, 6)

    def conv_w(k, cin, cout):   # HWIO
        return jax.random.normal(k, (3, 3, cin, cout), jnp.float32) / (3.0 * float(cin) ** 0.5)

    def bn_p(k, c):
        k1, k2, k3, k4 = jax.random.split(k, 4)
        gamma = 1.0 + 0.1 * jax.random.normal(k1, (c,), jnp.float32)
        beta = 0.1 * jax.random.normal(k2, (c,), jnp.float32)
        mean = 0.1 * jax.random.normal(k3, (c,), jnp.float32)
        var = jnp.abs(jax.random.normal(k4, (c,), jnp.float32)) + 0.5
        return gamma, beta, mean, var

    return {
        "conv_a": conv_w(ks[0], 3, 32),  "bn_a": bn_p(ks[1], 32),
        "conv_b": conv_w(ks[2], 32, 32), "bn_b": bn_p(ks[3], 32),
        "conv_c": conv_w(ks[4], 32, 64), "bn1":  bn_p(ks[5], 64),
    }


# ----------------------------------------------------------------------------
# Pure-JAX reference (f32) for a sanity check
# ----------------------------------------------------------------------------
def ref_forward(params, x_nchw):
    x = jnp.transpose(x_nchw, (0, 2, 3, 1))

    def conv(x, w, stride):
        return jax.lax.conv_general_dilated(
            x, w, (stride, stride), ((1, 1), (1, 1)),
            dimension_numbers=("NHWC", "HWIO", "NHWC"),
            precision=jax.lax.Precision.HIGHEST)

    def bnrelu(x, bnp):
        s, b = fold_bn(*bnp)
        return jnp.maximum(x * s + b, 0.0)

    x = bnrelu(conv(x, params["conv_a"], 2), params["bn_a"])
    x = bnrelu(conv(x, params["conv_b"], 1), params["bn_b"])
    x = bnrelu(conv(x, params["conv_c"], 1), params["bn1"])
    xp = jnp.pad(x, ((0, 0), (1, 1), (1, 1), (0, 0)), constant_values=-jnp.inf)
    x = jax.lax.reduce_window(xp, -jnp.inf, jax.lax.max,
                              (1, 3, 3, 1), (1, 2, 2, 1), "VALID")
    return jnp.transpose(x, (0, 3, 1, 2))


if __name__ == "__main__":
    key = jax.random.PRNGKey(0)
    pkey, xkey = jax.random.split(key)
    params = init_params(pkey)

    # NCHW input, like the PyTorch module (small synthetic shape).
    x = jax.random.normal(xkey, (2, 3, 16, 16), jnp.float32)

    y = jax.block_until_ready(jax.jit(front_forward)(params, x))
    assert y.shape == (2, 64, 4, 4), y.shape

    y_ref = jax.block_until_ready(ref_forward(params, x))
    err = float(jnp.max(jnp.abs(y - y_ref)))
    denom = float(jnp.max(jnp.abs(y_ref))) + 1e-6
    # bf16 MXU operands / bf16 intermediate activations vs f32 HIGHEST reference:
    # a few-percent relative error is expected and intentional.
    assert err / denom < 0.05, (err, denom)

    print("KERNEL_OK")
</pallas_src>

<mosaic_0001>
module attributes {stable_mosaic.version = 11 : i64} {
  func.func @stem_kernel(%arg0: i32, %arg1: memref<1x9x9x12xbf16, #tpu.memory_space<vmem>>, %arg2: memref<48x32xbf16, #tpu.memory_space<vmem>>, %arg3: memref<1x32xf32, #tpu.memory_space<vmem>>, %arg4: memref<1x32xf32, #tpu.memory_space<vmem>>, %arg5: memref<288x32xbf16, #tpu.memory_space<vmem>>, %arg6: memref<1x32xf32, #tpu.memory_space<vmem>>, %arg7: memref<1x32xf32, #tpu.memory_space<vmem>>, %arg8: memref<288x64xbf16, #tpu.memory_space<vmem>>, %arg9: memref<1x64xf32, #tpu.memory_space<vmem>>, %arg10: memref<1x64xf32, #tpu.memory_space<vmem>>, %arg11: memref<1x4x4x64xf32, #tpu.memory_space<vmem>>, %arg12: memref<10x10x32xbf16, #tpu.memory_space<vmem>>, %arg13: memref<10x10x32xbf16, #tpu.memory_space<vmem>>, %arg14: memref<10x10x64xf32, #tpu.memory_space<vmem>>, %arg15: memref<64x288xbf16, #tpu.memory_space<vmem>>) attributes {dimension_semantics = [#tpu.dimension_semantics<parallel>], iteration_bounds = array<i64: 2>, scalar_prefetch = 0 : i64, scratch_operands = 4 : i64, tpu.core_type = #tpu.core_type<tc>, window_params = [{transform_indices = @transform_0, window_bounds = array<i64: 1, 9, 9, 12>}, {pipeline_mode = #tpu.pipeline_mode<synchronous>, transform_indices = @transform_1, window_bounds = array<i64: 48, 32>}, {pipeline_mode = #tpu.pipeline_mode<synchronous>, transform_indices = @transform_2, window_bounds = array<i64: 1, 32>}, {pipeline_mode = #tpu.pipeline_mode<synchronous>, transform_indices = @transform_3, window_bounds = array<i64: 1, 32>}, {pipeline_mode = #tpu.pipeline_mode<synchronous>, transform_indices = @transform_4, window_bounds = array<i64: 288, 32>}, {pipeline_mode = #tpu.pipeline_mode<synchronous>, transform_indices = @transform_5, window_bounds = array<i64: 1, 32>}, {pipeline_mode = #tpu.pipeline_mode<synchronous>, transform_indices = @transform_6, window_bounds = array<i64: 1, 32>}, {pipeline_mode = #tpu.pipeline_mode<synchronous>, transform_indices = @transform_7, window_bounds = array<i64: 288, 64>}, {pipeline_mode = #tpu.pipeline_mode<synchronous>, transform_indices = @transform_8, window_bounds = array<i64: 1, 64>}, {pipeline_mode = #tpu.pipeline_mode<synchronous>, transform_indices = @transform_9, window_bounds = array<i64: 1, 64>}, {transform_indices = @transform_10, window_bounds = array<i64: 1, 4, 4, 64>}]} {
    %c0 = arith.constant 0 : index
    %c0_0 = arith.constant 0 : index
    %c0_1 = arith.constant 0 : index
    %c0_2 = arith.constant 0 : index
    %0 = vector.load %arg1[%c0, %c0_0, %c0_1, %c0_2] : memref<1x9x9x12xbf16, #tpu.memory_space<vmem>>, vector<1x9x9x12xbf16>
    %1 = vector.shape_cast %0 : vector<1x9x9x12xbf16> to vector<9x9x12xbf16>
    %2 = vector.extract_strided_slice %1 {offsets = [0, 0, 0], sizes = [8, 8, 12], strides = [1, 1, 1]} : vector<9x9x12xbf16> to vector<8x8x12xbf16>
    %3 = vector.shape_cast %2 : vector<8x8x12xbf16> to vector<64x12xbf16>
    %c0_3 = arith.constant 0 : index
    %c0_4 = arith.constant 0 : index
    %4 = vector.load %arg15[%c0_3, %c0_4] : memref<64x288xbf16, #tpu.memory_space<vmem>>, vector<64x12xbf16>
    tpu.vector_store %arg15[%c0_3, %c0_4], %3 {strides = array<i32>} : memref<64x288xbf16, #tpu.memory_space<vmem>>, vector<64x12xbf16>,
    %5 = vector.extract_strided_slice %1 {offsets = [0, 1, 0], sizes = [8, 8, 12], strides = [1, 1, 1]} : vector<9x9x12xbf16> to vector<8x8x12xbf16>
    %6 = vector.shape_cast %5 : vector<8x8x12xbf16> to vector<64x12xbf16>
    %c0_5 = arith.constant 0 : index
    %c12 = arith.constant 12 : index
    %7 = vector.load %arg15[%c0_5, %c12] : memref<64x288xbf16, #tpu.memory_space<vmem>>, vector<64x12xbf16>
    tpu.vector_store %arg15[%c0_5, %c12], %6 {strides = array<i32>} : memref<64x288xbf16, #tpu.memory_space<vmem>>, vector<64x12xbf16>,
    %8 = vector.extract_strided_slice %1 {offsets = [1, 0, 0], sizes = [8, 8, 12], strides = [1, 1, 1]} : vector<9x9x12xbf16> to vector<8x8x12xbf16>
    %9 = vector.shape_cast %8 : vector<8x8x12xbf16> to vector<64x12xbf16>
    %c0_6 = arith.constant 0 : index
    %c24 = arith.constant 24 : index
    %10 = vector.load %arg15[%c0_6, %c24] : memref<64x288xbf16, #tpu.memory_space<vmem>>, vector<64x12xbf16>
    tpu.vector_store %arg15[%c0_6, %c24], %9 {strides = array<i32>} : memref<64x288xbf16, #tpu.memory_space<vmem>>, vector<64x12xbf16>,
    %11 = vector.extract_strided_slice %1 {offsets = [1, 1, 0], sizes = [8, 8, 12], strides = [1, 1, 1]} : vector<9x9x12xbf16> to vector<8x8x12xbf16>
    %12 = vector.shape_cast %11 : vector<8x8x12xbf16> to vector<64x12xbf16>
    %c0_7 = arith.constant 0 : index
    %c36 = arith.constant 36 : index
    %13 = vector.load %arg15[%c0_7, %c36] : memref<64x288xbf16, #tpu.memory_space<vmem>>, vector<64x12xbf16>
    tpu.vector_store %arg15[%c0_7, %c36], %12 {strides = array<i32>} : memref<64x288xbf16, #tpu.memory_space<vmem>>, vector<64x12xbf16>,
    %c0_8 = arith.constant 0 : index
    %c0_9 = arith.constant 0 : index
    %14 = vector.load %arg15[%c0_8, %c0_9] : memref<64x288xbf16, #tpu.memory_space<vmem>>, vector<64x48xbf16>
    %c0_10 = arith.constant 0 : index
    %c0_11 = arith.constant 0 : index
    %15 = vector.load %arg2[%c0_10, %c0_11] : memref<48x32xbf16, #tpu.memory_space<vmem>>, vector<48x32xbf16>
    %cst = arith.constant dense<0.000000e+00> : vector<64x32xf32>
    %16 = tpu.matmul %14, %15, %cst {dimension_numbers = #tpu.dot_dimension_numbers<[1], [0], [0], [1], [0, 0, 1, 1], [], []>} : vector<64x48xbf16>, vector<48x32xbf16>, vector<64x32xf32> -> vector<64x32xf32>
    %c0_12 = arith.constant 0 : index
    %c0_13 = arith.constant 0 : index
    %17 = vector.load %arg3[%c0_12, %c0_13] : memref<1x32xf32, #tpu.memory_space<vmem>>, vector<1x32xf32>
    %18 = vector.broadcast %17 : vector<1x32xf32> to vector<64x32xf32>
    %19 = arith.mulf %16, %18 : vector<64x32xf32>
    %c0_14 = arith.constant 0 : index
    %c0_15 = arith.constant 0 : index
    %20 = vector.load %arg4[%c0_14, %c0_15] : memref<1x32xf32, #tpu.memory_space<vmem>>, vector<1x32xf32>
    %21 = vector.broadcast %20 : vector<1x32xf32> to vector<64x32xf32>
    %22 = arith.addf %19, %21 : vector<64x32xf32>
    %cst_16 = arith.constant 0.000000e+00 : f32
    %23 = vector.broadcast %cst_16 : f32 to vector<64x32xf32>
    %24 = arith.maximumf %22, %23 : vector<64x32xf32>
    %25 = vector.shape_cast %24 : vector<64x32xf32> to vector<8x8x32xf32>
    %26 = arith.truncf %25 : vector<8x8x32xf32> to vector<8x8x32xbf16>
    %cst_17 = arith.constant 0.000000e+00 : bf16
    %27 = vector.broadcast %cst_17 : bf16 to vector<8x1x32xbf16>
    %28 = tpu.concatenate %27, %26, %27 in 1 : vector<8x1x32xbf16>, vector<8x8x32xbf16>, vector<8x1x32xbf16> -> vector<8x10x32xbf16>
    %c1 = arith.constant 1 : index
    %c0_18 = arith.constant 0 : index
    %c0_19 = arith.constant 0 : index
    %29 = vector.load %arg12[%c1, %c0_18, %c0_19] : memref<10x10x32xbf16, #tpu.memory_space<vmem>>, vector<8x10x32xbf16>
    tpu.vector_store %arg12[%c1, %c0_18, %c0_19], %28 {strides = array<i32>} : memref<10x10x32xbf16, #tpu.memory_space<vmem>>, vector<8x10x32xbf16>,
    %cst_20 = arith.constant 0.000000e+00 : bf16
    %30 = vector.broadcast %cst_20 : bf16 to vector<1x10x32xbf16>
    %c0_21 = arith.constant 0 : index
    %c0_22 = arith.constant 0 : index
    %c0_23 = arith.constant 0 : index
    %31 = vector.load %arg12[%c0_21, %c0_22, %c0_23] : memref<10x10x32xbf16, #tpu.memory_space<vmem>>, vector<1x10x32xbf16>
    tpu.vector_store %arg12[%c0_21, %c0_22, %c0_23], %30 {strides = array<i32>} : memref<10x10x32xbf16, #tpu.memory_space<vmem>>, vector<1x10x32xbf16>,
    %c9 = arith.constant 9 : index
    %c0_24 = arith.constant 0 : index
    %c0_25 = arith.constant 0 : index
    %32 = vector.load %arg12[%c9, %c0_24, %c0_25] : memref<10x10x32xbf16, #tpu.memory_space<vmem>>, vector<1x10x32xbf16>
    tpu.vector_store %arg12[%c9, %c0_24, %c0_25], %30 {strides = array<i32>} : memref<10x10x32xbf16, #tpu.memory_space<vmem>>, vector<1x10x32xbf16>,
    %c0_26 = arith.constant 0 : index
    %c0_27 = arith.constant 0 : index
    %c0_28 = arith.constant 0 : index
    %33 = vector.load %arg12[%c0_26, %c0_27, %c0_28] : memref<10x10x32xbf16, #tpu.memory_space<vmem>>, vector<10x10x32xbf16>
    %34 = vector.extract_strided_slice %33 {offsets = [0, 0, 0], sizes = [8, 8, 32], strides = [1, 1, 1]} : vector<10x10x32xbf16> to vector<8x8x32xbf16>
    %35 = vector.shape_cast %34 : vector<8x8x32xbf16> to vector<64x32xbf16>
    %c0_29 = arith.constant 0 : index
    %c0_30 = arith.constant 0 : index
    %36 = vector.load %arg15[%c0_29, %c0_30] : memref<64x288xbf16, #tpu.memory_space<vmem>>, vector<64x32xbf16>
    tpu.vector_store %arg15[%c0_29, %c0_30], %35 {strides = array<i32>} : memref<64x288xbf16, #tpu.memory_space<vmem>>, vector<64x32xbf16>,
    %37 = vector.extract_strided_slice %33 {offsets = [0, 1, 0], sizes = [8, 8, 32], strides = [1, 1, 1]} : vector<10x10x32xbf16> to vector<8x8x32xbf16>
    %38 = vector.shape_cast %37 : vector<8x8x32xbf16> to vector<64x32xbf16>
    %c0_31 = arith.constant 0 : index
    %c32 = arith.constant 32 : index
    %39 = vector.load %arg15[%c0_31, %c32] : memref<64x288xbf16, #tpu.memory_space<vmem>>, vector<64x32xbf16>
    tpu.vector_store %arg15[%c0_31, %c32], %38 {strides = array<i32>} : memref<64x288xbf16, #tpu.memory_space<vmem>>, vector<64x32xbf16>,
    %40 = vector.extract_strided_slice %33 {offsets = [0, 2, 0], sizes = [8, 8, 32], strides = [1, 1, 1]} : vector<10x10x32xbf16> to vector<8x8x32xbf16>
    %41 = vector.shape_cast %40 : vector<8x8x32xbf16> to vector<64x32xbf16>
    %c0_32 = arith.constant 0 : index
    %c64 = arith.constant 64 : index
    %42 = vector.load %arg15[%c0_32, %c64] : memref<64x288xbf16, #tpu.memory_space<vmem>>, vector<64x32xbf16>
    tpu.vector_store %arg15[%c0_32, %c64], %41 {strides = array<i32>} : memref<64x288xbf16, #tpu.memory_space<vmem>>, vector<64x32xbf16>,
    %43 = vector.extract_strided_slice %33 {offsets = [1, 0, 0], sizes = [8, 8, 32], strides = [1, 1, 1]} : vector<10x10x32xbf16> to vector<8x8x32xbf16>
    %44 = vector.shape_cast %43 : vector<8x8x32xbf16> to vector<64x32xbf16>
    %c0_33 = arith.constant 0 : index
    %c96 = arith.constant 96 : index
    %45 = vector.load %arg15[%c0_33, %c96] : memref<64x288xbf16, #tpu.memory_space<vmem>>, vector<64x32xbf16>
    tpu.vector_store %arg15[%c0_33, %c96], %44 {strides = array<i32>} : memref<64x288xbf16, #tpu.memory_space<vmem>>, vector<64x32xbf16>,
    %46 = vector.extract_strided_slice %33 {offsets = [1, 1, 0], sizes = [8, 8, 32], strides = [1, 1, 1]} : vector<10x10x32xbf16> to vector<8x8x32xbf16>
    %47 = vector.shape_cast %46 : vector<8x8x32xbf16> to vector<64x32xbf16>
    %c0_34 = arith.constant 0 : index
    %c128 = arith.constant 128 : index
    %48 = vector.load %arg15[%c0_34, %c128] : memref<64x288xbf16, #tpu.memory_space<vmem>>, vector<64x32xbf16>
    tpu.vector_store %arg15[%c0_34, %c128], %47 {strides = array<i32>} : memref<64x288xbf16, #tpu.memory_space<vmem>>, vector<64x32xbf16>,
    %49 = vector.extract_strided_slice %33 {offsets = [1, 2, 0], sizes = [8, 8, 32], strides = [1, 1, 1]} : vector<10x10x32xbf16> to vector<8x8x32xbf16>
    %50 = vector.shape_cast %49 : vector<8x8x32xbf16> to vector<64x32xbf16>
    %c0_35 = arith.constant 0 : index
    %c160 = arith.constant 160 : index
    %51 = vector.load %arg15[%c0_35, %c160] : memref<64x288xbf16, #tpu.memory_space<vmem>>, vector<64x32xbf16>
    tpu.vector_store %arg15[%c0_35, %c160], %50 {strides = array<i32>} : memref<64x288xbf16, #tpu.memory_space<vmem>>, vector<64x32xbf16>,
    %52 = vector.extract_strided_slice %33 {offsets = [2, 0, 0], sizes = [8, 8, 32], strides = [1, 1, 1]} : vector<10x10x32xbf16> to vector<8x8x32xbf16>
    %53 = vector.shape_cast %52 : vector<8x8x32xbf16> to vector<64x32xbf16>
    %c0_36 = arith.constant 0 : index
    %c192 = arith.constant 192 : index
    %54 = vector.load %arg15[%c0_36, %c192] : memref<64x288xbf16, #tpu.memory_space<vmem>>, vector<64x32xbf16>
    tpu.vector_store %arg15[%c0_36, %c192], %53 {strides = array<i32>} : memref<64x288xbf16, #tpu.memory_space<vmem>>, vector<64x32xbf16>,
    %55 = vector.extract_strided_slice %33 {offsets = [2, 1, 0], sizes = [8, 8, 32], strides = [1, 1, 1]} : vector<10x10x32xbf16> to vector<8x8x32xbf16>
    %56 = vector.shape_cast %55 : vector<8x8x32xbf16> to vector<64x32xbf16>
    %c0_37 = arith.constant 0 : index
    %c224 = arith.constant 224 : index
    %57 = vector.load %arg15[%c0_37, %c224] : memref<64x288xbf16, #tpu.memory_space<vmem>>, vector<64x32xbf16>
    tpu.vector_store %arg15[%c0_37, %c224], %56 {strides = array<i32>} : memref<64x288xbf16, #tpu.memory_space<vmem>>, vector<64x32xbf16>,
    %58 = vector.extract_strided_slice %33 {offsets = [2, 2, 0], sizes = [8, 8, 32], strides = [1, 1, 1]} : vector<10x10x32xbf16> to vector<8x8x32xbf16>
    %59 = vector.shape_cast %58 : vector<8x8x32xbf16> to vector<64x32xbf16>
    %c0_38 = arith.constant 0 : index
    %c256 = arith.constant 256 : index
    %60 = vector.load %arg15[%c0_38, %c256] : memref<64x288xbf16, #tpu.memory_space<vmem>>, vector<64x32xbf16>
    tpu.vector_store %arg15[%c0_38, %c256], %59 {strides = array<i32>} : memref<64x288xbf16, #tpu.memory_space<vmem>>, vector<64x32xbf16>,
    %c0_39 = arith.constant 0 : index
    %c0_40 = arith.constant 0 : index
    %61 = vector.load %arg15[%c0_39, %c0_40] : memref<64x288xbf16, #tpu.memory_space<vmem>>, vector<64x288xbf16>
    %c0_41 = arith.constant 0 : index
    %c0_42 = arith.constant 0 : index
    %62 = vector.load %arg5[%c0_41, %c0_42] : memref<288x32xbf16, #tpu.memory_space<vmem>>, vector<288x32xbf16>
    %cst_43 = arith.constant dense<0.000000e+00> : vector<64x32xf32>
    %63 = tpu.matmul %61, %62, %cst_43 {dimension_numbers = #tpu.dot_dimension_numbers<[1], [0], [0], [1], [0, 0, 1, 1], [], []>} : vector<64x288xbf16>, vector<288x32xbf16>, vector<64x32xf32> -> vector<64x32xf32>
    %c0_44 = arith.constant 0 : index
    %c0_45 = arith.constant 0 : index
    %64 = vector.load %arg6[%c0_44, %c0_45] : memref<1x32xf32, #tpu.memory_space<vmem>>, vector<1x32xf32>
    %65 = vector.broadcast %64 : vector<1x32xf32> to vector<64x32xf32>
    %66 = arith.mulf %63, %65 : vector<64x32xf32>
    %c0_46 = arith.constant 0 : index
    %c0_47 = arith.constant 0 : index
    %67 = vector.load %arg7[%c0_46, %c0_47] : memref<1x32xf32, #tpu.memory_space<vmem>>, vector<1x32xf32>
    %68 = vector.broadcast %67 : vector<1x32xf32> to vector<64x32xf32>
    %69 = arith.addf %66, %68 : vector<64x32xf32>
    %cst_48 = arith.constant 0.000000e+00 : f32
    %70 = vector.broadcast %cst_48 : f32 to vector<64x32xf32>
    %71 = arith.maximumf %69, %70 : vector<64x32xf32>
    %72 = vector.shape_cast %71 : vector<64x32xf32> to vector<8x8x32xf32>
    %73 = arith.truncf %72 : vector<8x8x32xf32> to vector<8x8x32xbf16>
    %cst_49 = arith.constant 0.000000e+00 : bf16
    %74 = vector.broadcast %cst_49 : bf16 to vector<8x1x32xbf16>
    %75 = tpu.concatenate %74, %73, %74 in 1 : vector<8x1x32xbf16>, vector<8x8x32xbf16>, vector<8x1x32xbf16> -> vector<8x10x32xbf16>
    %c1_50 = arith.constant 1 : index
    %c0_51 = arith.constant 0 : index
    %c0_52 = arith.constant 0 : index
    %76 = vector.load %arg13[%c1_50, %c0_51, %c0_52] : memref<10x10x32xbf16, #tpu.memory_space<vmem>>, vector<8x10x32xbf16>
    tpu.vector_store %arg13[%c1_50, %c0_51, %c0_52], %75 {strides = array<i32>} : memref<10x10x32xbf16, #tpu.memory_space<vmem>>, vector<8x10x32xbf16>,
    %cst_53 = arith.constant 0.000000e+00 : bf16
    %77 = vector.broadcast %cst_53 : bf16 to vector<1x10x32xbf16>
    %c0_54 = arith.constant 0 : index
    %c0_55 = arith.constant 0 : index
    %c0_56 = arith.constant 0 : index
    %78 = vector.load %arg13[%c0_54, %c0_55, %c0_56] : memref<10x10x32xbf16, #tpu.memory_space<vmem>>, vector<1x10x32xbf16>
    tpu.vector_store %arg13[%c0_54, %c0_55, %c0_56], %77 {strides = array<i32>} : memref<10x10x32xbf16, #tpu.memory_space<vmem>>, vector<1x10x32xbf16>,
    %c9_57 = arith.constant 9 : index
    %c0_58 = arith.constant 0 : index
    %c0_59 = arith.constant 0 : index
    %79 = vector.load %arg13[%c9_57, %c0_58, %c0_59] : memref<10x10x32xbf16, #tpu.memory_space<vmem>>, vector<1x10x32xbf16>
    tpu.vector_store %arg13[%c9_57, %c0_58, %c0_59], %77 {strides = array<i32>} : memref<10x10x32xbf16, #tpu.memory_space<vmem>>, vector<1x10x32xbf16>,
    %c0_60 = arith.constant 0 : index
    %c0_61 = arith.constant 0 : index
    %c0_62 = arith.constant 0 : index
    %80 = vector.load %arg13[%c0_60, %c0_61, %c0_62] : memref<10x10x32xbf16, #tpu.memory_space<vmem>>, vector<10x10x32xbf16>
    %81 = vector.extract_strided_slice %80 {offsets = [0, 0, 0], sizes = [8, 8, 32], strides = [1, 1, 1]} : vector<10x10x32xbf16> to vector<8x8x32xbf16>
    %82 = vector.shape_cast %81 : vector<8x8x32xbf16> to vector<64x32xbf16>
    %c0_63 = arith.constant 0 : index
    %c0_64 = arith.constant 0 : index
    %83 = vector.load %arg15[%c0_63, %c0_64] : memref<64x288xbf16, #tpu.memory_space<vmem>>, vector<64x32xbf16>
    tpu.vector_store %arg15[%c0_63, %c0_64], %82 {strides = array<i32>} : memref<64x288xbf16, #tpu.memory_space<vmem>>, vector<64x32xbf16>,
    %84 = vector.extract_strided_slice %80 {offsets = [0, 1, 0], sizes = [8, 8, 32], strides = [1, 1, 1]} : vector<10x10x32xbf16> to vector<8x8x32xbf16>
    %85 = vector.shape_cast %84 : vector<8x8x32xbf16> to vector<64x32xbf16>
    %c0_65 = arith.constant 0 : index
    %c32_66 = arith.constant 32 : index
    %86 = vector.load %arg15[%c0_65, %c32_66] : memref<64x288xbf16, #tpu.memory_space<vmem>>, vector<64x32xbf16>
    tpu.vector_store %arg15[%c0_65, %c32_66], %85 {strides = array<i32>} : memref<64x288xbf16, #tpu.memory_space<vmem>>, vector<64x32xbf16>,
    %87 = vector.extract_strided_slice %80 {offsets = [0, 2, 0], sizes = [8, 8, 32], strides = [1, 1, 1]} : vector<10x10x32xbf16> to vector<8x8x32xbf16>
    %88 = vector.shape_cast %87 : vector<8x8x32xbf16> to vector<64x32xbf16>
    %c0_67 = arith.constant 0 : index
    %c64_68 = arith.constant 64 : index
    %89 = vector.load %arg15[%c0_67, %c64_68] : memref<64x288xbf16, #tpu.memory_space<vmem>>, vector<64x32xbf16>
    tpu.vector_store %arg15[%c0_67, %c64_68], %88 {strides = array<i32>} : memref<64x288xbf16, #tpu.memory_space<vmem>>, vector<64x32xbf16>,
    %90 = vector.extract_strided_slice %80 {offsets = [1, 0, 0], sizes = [8, 8, 32], strides = [1, 1, 1]} : vector<10x10x32xbf16> to vector<8x8x32xbf16>
    %91 = vector.shape_cast %90 : vector<8x8x32xbf16> to vector<64x32xbf16>
    %c0_69 = arith.constant 0 : index
    %c96_70 = arith.constant 96 : index
    %92 = vector.load %arg15[%c0_69, %c96_70] : memref<64x288xbf16, #tpu.memory_space<vmem>>, vector<64x32xbf16>
    tpu.vector_store %arg15[%c0_69, %c96_70], %91 {strides = array<i32>} : memref<64x288xbf16, #tpu.memory_space<vmem>>, vector<64x32xbf16>,
    %93 = vector.extract_strided_slice %80 {offsets = [1, 1, 0], sizes = [8, 8, 32], strides = [1, 1, 1]} : vector<10x10x32xbf16> to vector<8x8x32xbf16>
    %94 = vector.shape_cast %93 : vector<8x8x32xbf16> to vector<64x32xbf16>
    %c0_71 = arith.constant 0 : index
    %c128_72 = arith.constant 128 : index
    %95 = vector.load %arg15[%c0_71, %c128_72] : memref<64x288xbf16, #tpu.memory_space<vmem>>, vector<64x32xbf16>
    tpu.vector_store %arg15[%c0_71, %c128_72], %94 {strides = array<i32>} : memref<64x288xbf16, #tpu.memory_space<vmem>>, vector<64x32xbf16>,
    %96 = vector.extract_strided_slice %80 {offsets = [1, 2, 0], sizes = [8, 8, 32], strides = [1, 1, 1]} : vector<10x10x32xbf16> to vector<8x8x32xbf16>
    %97 = vector.shape_cast %96 : vector<8x8x32xbf16> to vector<64x32xbf16>
    %c0_73 = arith.constant 0 : index
    %c160_74 = arith.constant 160 : index
    %98 = vector.load %arg15[%c0_73, %c160_74] : memref<64x288xbf16, #tpu.memory_space<vmem>>, vector<64x32xbf16>
    tpu.vector_store %arg15[%c0_73, %c160_74], %97 {strides = array<i32>} : memref<64x288xbf16, #tpu.memory_space<vmem>>, vector<64x32xbf16>,
    %99 = vector.extract_strided_slice %80 {offsets = [2, 0, 0], sizes = [8, 8, 32], strides = [1, 1, 1]} : vector<10x10x32xbf16> to vector<8x8x32xbf16>
    %100 = vector.shape_cast %99 : vector<8x8x32xbf16> to vector<64x32xbf16>
    %c0_75 = arith.constant 0 : index
    %c192_76 = arith.constant 192 : index
    %101 = vector.load %arg15[%c0_75, %c192_76] : memref<64x288xbf16, #tpu.memory_space<vmem>>, vector<64x32xbf16>
    tpu.vector_store %arg15[%c0_75, %c192_76], %100 {strides = array<i32>} : memref<64x288xbf16, #tpu.memory_space<vmem>>, vector<64x32xbf16>,
    %102 = vector.extract_strided_slice %80 {offsets = [2, 1, 0], sizes = [8, 8, 32], strides = [1, 1, 1]} : vector<10x10x32xbf16> to vector<8x8x32xbf16>
    %103 = vector.shape_cast %102 : vector<8x8x32xbf16> to vector<64x32xbf16>
    %c0_77 = arith.constant 0 : index
    %c224_78 = arith.constant 224 : index
    %104 = vector.load %arg15[%c0_77, %c224_78] : memref<64x288xbf16, #tpu.memory_space<vmem>>, vector<64x32xbf16>
    tpu.vector_store %arg15[%c0_77, %c224_78], %103 {strides = array<i32>} : memref<64x288xbf16, #tpu.memory_space<vmem>>, vector<64x32xbf16>,
    %105 = vector.extract_strided_slice %80 {offsets = [2, 2, 0], sizes = [8, 8, 32], strides = [1, 1, 1]} : vector<10x10x32xbf16> to vector<8x8x32xbf16>
    %106 = vector.shape_cast %105 : vector<8x8x32xbf16> to vector<64x32xbf16>
    %c0_79 = arith.constant 0 : index
    %c256_80 = arith.constant 256 : index
    %107 = vector.load %arg15[%c0_79, %c256_80] : memref<64x288xbf16, #tpu.memory_space<vmem>>, vector<64x32xbf16>
    tpu.vector_store %arg15[%c0_79, %c256_80], %106 {strides = array<i32>} : memref<64x288xbf16, #tpu.memory_space<vmem>>, vector<64x32xbf16>,
    %c0_81 = arith.constant 0 : index
    %c0_82 = arith.constant 0 : index
    %108 = vector.load %arg15[%c0_81, %c0_82] : memref<64x288xbf16, #tpu.memory_space<vmem>>, vector<64x288xbf16>
    %c0_83 = arith.constant 0 : index
    %c0_84 = arith.constant 0 : index
    %109 = vector.load %arg8[%c0_83, %c0_84] : memref<288x64xbf16, #tpu.memory_space<vmem>>, vector<288x64xbf16>
    %cst_85 = arith.constant dense<0.000000e+00> : vector<64x64xf32>
    %110 = tpu.matmul %108, %109, %cst_85 {dimension_numbers = #tpu.dot_dimension_numbers<[1], [0], [0], [1], [0, 0, 1, 1], [], []>} : vector<64x288xbf16>, vector<288x64xbf16>, vector<64x64xf32> -> vector<64x64xf32>
    %c0_86 = arith.constant 0 : index
    %c0_87 = arith.constant 0 : index
    %111 = vector.load %arg9[%c0_86, %c0_87] : memref<1x64xf32, #tpu.memory_space<vmem>>, vector<1x64xf32>
    %112 = vector.broadcast %111 : vector<1x64xf32> to vector<64x64xf32>
    %113 = arith.mulf %110, %112 : vector<64x64xf32>
    %c0_88 = arith.constant 0 : index
    %c0_89 = arith.constant 0 : index
    %114 = vector.load %arg10[%c0_88, %c0_89] : memref<1x64xf32, #tpu.memory_space<vmem>>, vector<1x64xf32>
    %115 = vector.broadcast %114 : vector<1x64xf32> to vector<64x64xf32>
    %116 = arith.addf %113, %115 : vector<64x64xf32>
    %cst_90 = arith.constant 0.000000e+00 : f32
    %117 = vector.broadcast %cst_90 : f32 to vector<64x64xf32>
    %118 = arith.maximumf %116, %117 : vector<64x64xf32>
    %119 = vector.shape_cast %118 : vector<64x64xf32> to vector<8x8x64xf32>
    %cst_91 = arith.constant 0.000000e+00 : f32
    %120 = vector.broadcast %cst_91 : f32 to vector<8x1x64xf32>
    %121 = tpu.concatenate %120, %119, %120 in 1 : vector<8x1x64xf32>, vector<8x8x64xf32>, vector<8x1x64xf32> -> vector<8x10x64xf32>
    %c1_92 = arith.constant 1 : index
    %c0_93 = arith.constant 0 : index
    %c0_94 = arith.constant 0 : index
    %122 = vector.load %arg14[%c1_92, %c0_93, %c0_94] : memref<10x10x64xf32, #tpu.memory_space<vmem>>, vector<8x10x64xf32>
    tpu.vector_store %arg14[%c1_92, %c0_93, %c0_94], %121 {strides = array<i32>} : memref<10x10x64xf32, #tpu.memory_space<vmem>>, vector<8x10x64xf32>,
    %cst_95 = arith.constant 0.000000e+00 : f32
    %123 = vector.broadcast %cst_95 : f32 to vector<1x10x64xf32>
    %c0_96 = arith.constant 0 : index
    %c0_97 = arith.constant 0 : index
    %c0_98 = arith.constant 0 : index
    %124 = vector.load %arg14[%c0_96, %c0_97, %c0_98] : memref<10x10x64xf32, #tpu.memory_space<vmem>>, vector<1x10x64xf32>
    tpu.vector_store %arg14[%c0_96, %c0_97, %c0_98], %123 {strides = array<i32>} : memref<10x10x64xf32, #tpu.memory_space<vmem>>, vector<1x10x64xf32>,
    %c9_99 = arith.constant 9 : index
    %c0_100 = arith.constant 0 : index
    %c0_101 = arith.constant 0 : index
    %125 = vector.load %arg14[%c9_99, %c0_100, %c0_101] : memref<10x10x64xf32, #tpu.memory_space<vmem>>, vector<1x10x64xf32>
    tpu.vector_store %arg14[%c9_99, %c0_100, %c0_101], %123 {strides = array<i32>} : memref<10x10x64xf32, #tpu.memory_space<vmem>>, vector<1x10x64xf32>,
    %c0_102 = arith.constant 0 : index
    %c0_103 = arith.constant 0 : index
    %c0_104 = arith.constant 0 : index
    %126 = tpu.strided_load %arg14[%c0_102, %c0_103, %c0_104] {strides = array<i32: 1, 2, 1>} : memref<10x10x64xf32, #tpu.memory_space<vmem>>, vector<10x4x64xf32>
    %c0_105 = arith.constant 0 : index
    %c1_106 = arith.constant 1 : index
    %c0_107 = arith.constant 0 : index
    %127 = tpu.strided_load %arg14[%c0_105, %c1_106, %c0_107] {strides = array<i32: 1, 2, 1>} : memref<10x10x64xf32, #tpu.memory_space<vmem>>, vector<10x4x64xf32>
    %c0_108 = arith.constant 0 : index
    %c2 = arith.constant 2 : index
    %c0_109 = arith.constant 0 : index
    %128 = tpu.strided_load %arg14[%c0_108, %c2, %c0_109] {strides = array<i32: 1, 2, 1>} : memref<10x10x64xf32, #tpu.memory_space<vmem>>, vector<10x4x64xf32>
    %129 = arith.maximumf %126, %127 : vector<10x4x64xf32>
    %130 = arith.maximumf %129, %128 : vector<10x4x64xf32>
    %131 = vector.shape_cast %130 : vector<10x4x64xf32> to vector<5x2x4x64xf32>
    %132 = vector.extract_strided_slice %131 {offsets = [0, 0, 0, 0], sizes = [4, 1, 4, 64], strides = [1, 1, 1, 1]} : vector<5x2x4x64xf32> to vector<4x1x4x64xf32>
    %133 = vector.shape_cast %132 : vector<4x1x4x64xf32> to vector<4x4x64xf32>
    %134 = vector.extract_strided_slice %131 {offsets = [0, 1, 0, 0], sizes = [4, 1, 4, 64], strides = [1, 1, 1, 1]} : vector<5x2x4x64xf32> to vector<4x1x4x64xf32>
    %135 = vector.shape_cast %134 : vector<4x1x4x64xf32> to vector<4x4x64xf32>
    %136 = arith.maximumf %133, %135 : vector<4x4x64xf32>
    %137 = vector.extract_strided_slice %131 {offsets = [1, 0, 0, 0], sizes = [4, 1, 4, 64], strides = [1, 1, 1, 1]} : vector<5x2x4x64xf32> to vector<4x1x4x64xf32>
    %138 = vector.shape_cast %137 : vector<4x1x4x64xf32> to vector<4x4x64xf32>
    %139 = arith.maximumf %136, %138 : vector<4x4x64xf32>
    %c0_110 = arith.constant 0 : index
    %c0_111 = arith.constant 0 : index
    %c0_112 = arith.constant 0 : index
    %c0_113 = arith.constant 0 : index
    %140 = vector.load %arg11[%c0_110, %c0_111, %c0_112, %c0_113] : memref<1x4x4x64xf32, #tpu.memory_space<vmem>>, vector<1x4x4x64xf32>
    %141 = vector.shape_cast %140 : vector<1x4x4x64xf32> to vector<4x4x64xf32>
    %142 = vector.shape_cast %139 : vector<4x4x64xf32> to vector<1x4x4x64xf32>
    tpu.vector_store %arg11[%c0_110, %c0_111, %c0_112, %c0_113], %142 {strides = array<i32>} : memref<1x4x4x64xf32, #tpu.memory_space<vmem>>, vector<1x4x4x64xf32>,
    return
  }
  func.func @transform_0(%arg0: i32) -> (i32, i32, i32, i32) {
    %c0_i32 = arith.constant 0 : i32
    %c0_i32_0 = arith.constant 0 : i32
    %c0_i32_1 = arith.constant 0 : i32
    %c0_i32_2 = arith.constant 0 : i32
    return %arg0, %c0_i32, %c0_i32_0, %c0_i32_1 : i32, i32, i32, i32
  }
  func.func @transform_1(%arg0: i32) -> (i32, i32) {
    %c0_i32 = arith.constant 0 : i32
    %c0_i32_0 = arith.constant 0 : i32
    %c0_i32_1 = arith.constant 0 : i32
    return %c0_i32, %c0_i32_0 : i32, i32
  }
  func.func @transform_2(%arg0: i32) -> (i32, i32) {
    %c0_i32 = arith.constant 0 : i32
    %c0_i32_0 = arith.constant 0 : i32
    %c0_i32_1 = arith.constant 0 : i32
    return %c0_i32, %c0_i32_0 : i32, i32
  }
  func.func @transform_3(%arg0: i32) -> (i32, i32) {
    %c0_i32 = arith.constant 0 : i32
    %c0_i32_0 = arith.constant 0 : i32
    %c0_i32_1 = arith.constant 0 : i32
    return %c0_i32, %c0_i32_0 : i32, i32
  }
  func.func @transform_4(%arg0: i32) -> (i32, i32) {
    %c0_i32 = arith.constant 0 : i32
    %c0_i32_0 = arith.constant 0 : i32
    %c0_i32_1 = arith.constant 0 : i32
    return %c0_i32, %c0_i32_0 : i32, i32
  }
  func.func @transform_5(%arg0: i32) -> (i32, i32) {
    %c0_i32 = arith.constant 0 : i32
    %c0_i32_0 = arith.constant 0 : i32
    %c0_i32_1 = arith.constant 0 : i32
    return %c0_i32, %c0_i32_0 : i32, i32
  }
  func.func @transform_6(%arg0: i32) -> (i32, i32) {
    %c0_i32 = arith.constant 0 : i32
    %c0_i32_0 = arith.constant 0 : i32
    %c0_i32_1 = arith.constant 0 : i32
    return %c0_i32, %c0_i32_0 : i32, i32
  }
  func.func @transform_7(%arg0: i32) -> (i32, i32) {
    %c0_i32 = arith.constant 0 : i32
    %c0_i32_0 = arith.constant 0 : i32
    %c0_i32_1 = arith.constant 0 : i32
    return %c0_i32, %c0_i32_0 : i32, i32
  }
  func.func @transform_8(%arg0: i32) -> (i32, i32) {
    %c0_i32 = arith.constant 0 : i32
    %c0_i32_0 = arith.constant 0 : i32
    %c0_i32_1 = arith.constant 0 : i32
    return %c0_i32, %c0_i32_0 : i32, i32
  }
  func.func @transform_9(%arg0: i32) -> (i32, i32) {
    %c0_i32 = arith.constant 0 : i32
    %c0_i32_0 = arith.constant 0 : i32
    %c0_i32_1 = arith.constant 0 : i32
    return %c0_i32, %c0_i32_0 : i32, i32
  }
  func.func @transform_10(%arg0: i32) -> (i32, i32, i32, i32) {
    %c0_i32 = arith.constant 0 : i32
    %c0_i32_0 = arith.constant 0 : i32
    %c0_i32_1 = arith.constant 0 : i32
    %c0_i32_2 = arith.constant 0 : i32
    return %arg0, %c0_i32, %c0_i32_0, %c0_i32_1 : i32, i32, i32, i32
  }
}

</mosaic_0001>

<llo_original>
// kernel: front_forward.1
$region0: #{front_forward.1}
  #allocation0 [shape = 'u32[]', space=smem, size = 0x4, offset = 0x4, fixed_abs, tag = 'smem constant byte address 0x4 - core index']
  #allocation1 [shape = 'u32[144,128]{1,0:T(1,128)}', space=vmem, size = 0x12000, scoped, tag = 'internal scratch']
  #allocation2 [shape = 'bf16[10,10,32]{2,1,0:T(8,128)(2,1)}', space=vmem, size = 0xa000, scoped, tag = 'scratch operand']
  #allocation3 [shape = 'bf16[10,10,32]{2,1,0:T(8,128)(2,1)}', space=vmem, size = 0xa000, scoped, tag = 'scratch operand']
  #allocation4 [shape = 'f32[10,10,64]{2,1,0:T(8,128)}', space=vmem, size = 0x14000, scoped, tag = 'scratch operand']
  #allocation5 [shape = 'bf16[64,288]{1,0:T(16,128)(2,1)}', space=vmem, size = 0xc000, scoped, tag = 'scratch operand']
  %s0 = inlined_call_operand.vmem [shape: bf16[2,9,9,12], index: 0, kind: input, shape index: {}]
  %s1 = inlined_call_operand.vmem [shape: bf16[48,32], index: 1, kind: input, shape index: {}]
  %s2 = inlined_call_operand.vmem [shape: f32[1,32], index: 2, kind: input, shape index: {}]
  %s3 = inlined_call_operand.vmem [shape: f32[1,32], index: 3, kind: input, shape index: {}]
  %s4 = inlined_call_operand.vmem [shape: bf16[288,32], index: 4, kind: input, shape index: {}]
  %s5 = inlined_call_operand.vmem [shape: f32[1,32], index: 5, kind: input, shape index: {}]
  %s6 = inlined_call_operand.vmem [shape: f32[1,32], index: 6, kind: input, shape index: {}]
  %s7 = inlined_call_operand.vmem [shape: bf16[288,64], index: 7, kind: input, shape index: {}]
  %s8 = inlined_call_operand.vmem [shape: f32[1,64], index: 8, kind: input, shape index: {}]
  %s9 = inlined_call_operand.vmem [shape: f32[1,64], index: 9, kind: input, shape index: {}]
  %s10 = inlined_call_operand.hbm [shape: f32[2,4,4,64], index: 10, kind: output, shape index: {}]
  %s11 = sld [smem:[#allocation0]]
  $region73: #{front_forward.1} parent=0
    _
  %s13 = ssub.s32 1, %s11
  %s14 = scalar_select 0, %s13, %s11
  $region1: #{front_forward.1} parent=0
    #allocation6 [shape = 'u8[16384]{0}', space=vmem, size = 0x4000, scoped, tag = 'output window, operand 0']
    #allocation7 [shape = 's32[2]{0}', space=sflag, size = 0x8, scoped, tag = 'scoped memory for front_forward.1']
    %15 = vsyncpa [#allocation7], 0
    %s16 = scalar_lea.sflag [#allocation7], 1
    %17 = vsyncpa %s16, 0
    loop: start=0, step=1, limit=4
    $region2: #{front_forward.1} parent=1 // loop_pre_header
      _
    $region3: #{front_forward.1} parent=1 // loop_header
      %s19 = sphi 0, %s23
      %p20 = scmp.ge.s32.totalorder %s19, 4
      %s29 = sphi 0, %s31
      %s32 = sphi 0, %s29
      %s33 = sphi 0, %s32
      %s49 = sphi 0, %s33
      %s53 = sphi 0, %s53
      %s55 = sphi 0, %s53
      %s56 = sphi 0, %s55
      %s70 = sphi 0, %s56
      %s74 = sphi 0, %s74
      %s76 = sphi 0, %s74
      %s77 = sphi 0, %s76
      %s91 = sphi 0, %s77
      %s95 = sphi 0, %s95
      %s97 = sphi 0, %s95
      %s98 = sphi 0, %s97
      %s112 = sphi 0, %s98
      %s116 = sphi 0, %s116
      %s118 = sphi 0, %s116
      %s119 = sphi 0, %s118
      %s133 = sphi 0, %s119
      %s137 = sphi 0, %s137
      %s139 = sphi 0, %s137
      %s140 = sphi 0, %s139
      %s154 = sphi 0, %s140
      %s158 = sphi 0, %s158
      %s160 = sphi 0, %s158
      %s161 = sphi 0, %s160
      %s175 = sphi 0, %s161
      %s179 = sphi 0, %s179
      %s181 = sphi 0, %s179
      %s182 = sphi 0, %s181
      %s196 = sphi 0, %s182
      %s200 = sphi 0, %s200
      %s202 = sphi 0, %s200
      %s203 = sphi 0, %s202
      %s217 = sphi 0, %s203
      %s221 = sphi 0, %s221
      %s223 = sphi 0, %s221
      %s224 = sphi 0, %s223
      %s238 = sphi 0, %s224
      %s244 = sphi 0, %s246
      %s247 = sphi 0, %s244
      %s248 = sphi 0, %s247
      %s264 = sphi 0, %s248
    $region4: #{front_forward.1} parent=1 // loop_header_branch
      %22 = sbr.rel (%p20) target = $region8
    $region5: #{front_forward.1} parent=1 // loop_body
      %s24 = ssub.s32 %s19, 1
      %s25 = ssub.s32 %s19, 2
      %s26 = sadd.s32 %s19, 1
      %s27 = ssub.s32 %s19, %s26
      %p28 = scmp.eq.s32.totalorder %s27, 0
      %s30 = sadd.s32 %s29, 1
      %s31 = scalar_select %p28, %s29, %s30
      %p34 = pneg %p28
      %p35 = scmp.eq.s32.totalorder %s19, 1
      %p36 = por %p34, %p35
      %p37 = scmp.ne.s32.totalorder %s29, %s32
      %p38 = scmp.eq.s32.totalorder %s19, 0
      %p39 = por %p37, %p38
      %p40 = scmp.ne.s32.totalorder %s29, %s32
      %p41 = scmp.eq.s32.totalorder %s24, 1
      %p42 = por %p40, %p41
      %p43 = scmp.ne.s32.totalorder %s32, %s33
      %p44 = scmp.eq.s32.totalorder %s24, 0
      %p45 = por %p43, %p44
      %p46 = scmp.ne.s32.totalorder %s32, %s33
      %p47 = scmp.eq.s32.totalorder %s25, 1
      %p48 = por %p46, %p47
      %p50 = scmp.ne.s32.totalorder %s33, %s49
      %p51 = scmp.eq.s32.totalorder %s25, 0
      %p52 = por %p50, %p51
      %s54 = sadd.s32 %s53, 1
      %p57 = scmp.eq.s32.totalorder %s19, 1
      %p58 = scmp.ne.s32.totalorder %s53, %s55
      %p59 = scmp.eq.s32.totalorder %s19, 0
      %p60 = por %p58, %p59
      %p61 = scmp.ne.s32.totalorder %s53, %s55
      %p62 = scmp.eq.s32.totalorder %s24, 1
      %p63 = por %p61, %p62
      %p64 = scmp.ne.s32.totalorder %s55, %s56
      %p65 = scmp.eq.s32.totalorder %s24, 0
      %p66 = por %p64, %p65
      %p67 = scmp.ne.s32.totalorder %s55, %s56
      %p68 = scmp.eq.s32.totalorder %s25, 1
      %p69 = por %p67, %p68
      %p71 = scmp.ne.s32.totalorder %s56, %s70
      %p72 = scmp.eq.s32.totalorder %s25, 0
      %p73 = por %p71, %p72
      %s75 = sadd.s32 %s74, 1
      %p78 = scmp.eq.s32.totalorder %s19, 1
      %p79 = scmp.ne.s32.totalorder %s74, %s76
      %p80 = scmp.eq.s32.totalorder %s19, 0
      %p81 = por %p79, %p80
      %p82 = scmp.ne.s32.totalorder %s74, %s76
      %p83 = scmp.eq.s32.totalorder %s24, 1
      %p84 = por %p82, %p83
      %p85 = scmp.ne.s32.totalorder %s76, %s77
      %p86 = scmp.eq.s32.totalorder %s24, 0
      %p87 = por %p85, %p86
      %p88 = scmp.ne.s32.totalorder %s76, %s77
      %p89 = scmp.eq.s32.totalorder %s25, 1
      %p90 = por %p88, %p89
      %p92 = scmp.ne.s32.totalorder %s77, %s91
      %p93 = scmp.eq.s32.totalorder %s25, 0
      %p94 = por %p92, %p93
      %s96 = sadd.s32 %s95, 1
      %p99 = scmp.eq.s32.totalorder %s19, 1
      %p100 = scmp.ne.s32.totalorder %s95, %s97
      %p101 = scmp.eq.s32.totalorder %s19, 0
      %p102 = por %p100, %p101
      %p103 = scmp.ne.s32.totalorder %s95, %s97
      %p104 = scmp.eq.s32.totalorder %s24, 1
      %p105 = por %p103, %p104
      %p106 = scmp.ne.s32.totalorder %s97, %s98
      %p107 = scmp.eq.s32.totalorder %s24, 0
      %p108 = por %p106, %p107
      %p109 = scmp.ne.s32.totalorder %s97, %s98
      %p110 = scmp.eq.s32.totalorder %s25, 1
      %p111 = por %p109, %p110
      %p113 = scmp.ne.s32.totalorder %s98, %s112
      %p114 = scmp.eq.s32.totalorder %s25, 0
      %p115 = por %p113, %p114
      %s117 = sadd.s32 %s116, 1
      %p120 = scmp.eq.s32.totalorder %s19, 1
      %p121 = scmp.ne.s32.totalorder %s116, %s118
      %p122 = scmp.eq.s32.totalorder %s19, 0
      %p123 = por %p121, %p122
      %p124 = scmp.ne.s32.totalorder %s116, %s118
      %p125 = scmp.eq.s32.totalorder %s24, 1
      %p126 = por %p124, %p125
      %p127 = scmp.ne.s32.totalorder %s118, %s119
      %p128 = scmp.eq.s32.totalorder %s24, 0
      %p129 = por %p127, %p128
      %p130 = scmp.ne.s32.totalorder %s118, %s119
      %p131 = scmp.eq.s32.totalorder %s25, 1
      %p132 = por %p130, %p131
      %p134 = scmp.ne.s32.totalorder %s119, %s133
      %p135 = scmp.eq.s32.totalorder %s25, 0
      %p136 = por %p134, %p135
      %s138 = sadd.s32 %s137, 1
      %p141 = scmp.eq.s32.totalorder %s19, 1
      %p142 = scmp.ne.s32.totalorder %s137, %s139
      %p143 = scmp.eq.s32.totalorder %s19, 0
      %p144 = por %p142, %p143
      %p145 = scmp.ne.s32.totalorder %s137, %s139
      %p146 = scmp.eq.s32.totalorder %s24, 1
      %p147 = por %p145, %p146
      %p148 = scmp.ne.s32.totalorder %s139, %s140
      %p149 = scmp.eq.s32.totalorder %s24, 0
      %p150 = por %p148, %p149
      %p151 = scmp.ne.s32.totalorder %s139, %s140
      %p152 = scmp.eq.s32.totalorder %s25, 1
      %p153 = por %p151, %p152
      %p155 = scmp.ne.s32.totalorder %s140, %s154
      %p156 = scmp.eq.s32.totalorder %s25, 0
      %p157 = por %p155, %p156
      %s159 = sadd.s32 %s158, 1
      %p162 = scmp.eq.s32.totalorder %s19, 1
      %p163 = scmp.ne.s32.totalorder %s158, %s160
      %p164 = scmp.eq.s32.totalorder %s19, 0
      %p165 = por %p163, %p164
      %p166 = scmp.ne.s32.totalorder %s158, %s160
      %p167 = scmp.eq.s32.totalorder %s24, 1
      %p168 = por %p166, %p167
      %p169 = scmp.ne.s32.totalorder %s160, %s161
      %p170 = scmp.eq.s32.totalorder %s24, 0
      %p171 = por %p169, %p170
      %p172 = scmp.ne.s32.totalorder %s160, %s161
      %p173 = scmp.eq.s32.totalorder %s25, 1
      %p174 = por %p172, %p173
      %p176 = scmp.ne.s32.totalorder %s161, %s175
      %p177 = scmp.eq.s32.totalorder %s25, 0
      %p178 = por %p176, %p177
      %s180 = sadd.s32 %s179, 1
      %p183 = scmp.eq.s32.totalorder %s19, 1
      %p184 = scmp.ne.s32.totalorder %s179, %s181
      %p185 = scmp.eq.s32.totalorder %s19, 0
      %p186 = por %p184, %p185
      %p187 = scmp.ne.s32.totalorder %s179, %s181
      %p188 = scmp.eq.s32.totalorder %s24, 1
      %p189 = por %p187, %p188
      %p190 = scmp.ne.s32.totalorder %s181, %s182
      %p191 = scmp.eq.s32.totalorder %s24, 0
      %p192 = por %p190, %p191
      %p193 = scmp.ne.s32.totalorder %s181, %s182
      %p194 = scmp.eq.s32.totalorder %s25, 1
      %p195 = por %p193, %p194
      %p197 = scmp.ne.s32.totalorder %s182, %s196
      %p198 = scmp.eq.s32.totalorder %s25, 0
      %p199 = por %p197, %p198
      %s201 = sadd.s32 %s200, 1
      %p204 = scmp.eq.s32.totalorder %s19, 1
      %p205 = scmp.ne.s32.totalorder %s200, %s202
      %p206 = scmp.eq.s32.totalorder %s19, 0
      %p207 = por %p205, %p206
      %p208 = scmp.ne.s32.totalorder %s200, %s202
      %p209 = scmp.eq.s32.totalorder %s24, 1
      %p210 = por %p208, %p209
      %p211 = scmp.ne.s32.totalorder %s202, %s203
      %p212 = scmp.eq.s32.totalorder %s24, 0
      %p213 = por %p211, %p212
      %p214 = scmp.ne.s32.totalorder %s202, %s203
      %p215 = scmp.eq.s32.totalorder %s25, 1
      %p216 = por %p214, %p215
      %p218 = scmp.ne.s32.totalorder %s203, %s217
      %p219 = scmp.eq.s32.totalorder %s25, 0
      %p220 = por %p218, %p219
      %s222 = sadd.s32 %s221, 1
      %p225 = scmp.eq.s32.totalorder %s19, 1
      %p226 = scmp.ne.s32.totalorder %s221, %s223
      %p227 = scmp.eq.s32.totalorder %s19, 0
      %p228 = por %p226, %p227
      %p229 = scmp.ne.s32.totalorder %s221, %s223
      %p230 = scmp.eq.s32.totalorder %s24, 1
      %p231 = por %p229, %p230
      %p232 = scmp.ne.s32.totalorder %s223, %s224
      %p233 = scmp.eq.s32.totalorder %s24, 0
      %p234 = por %p232, %p233
      %p235 = scmp.ne.s32.totalorder %s223, %s224
      %p236 = scmp.eq.s32.totalorder %s25, 1
      %p237 = por %p235, %p236
      %p239 = scmp.ne.s32.totalorder %s224, %s238
      %p240 = scmp.eq.s32.totalorder %s25, 0
      %p241 = por %p239, %p240
      %s242 = ssub.s32 %s19, %s26
      %p243 = scmp.eq.s32.totalorder %s242, 0
      %s245 = sadd.s32 %s244, 1
      %s246 = scalar_select %p243, %s244, %s245
      %p249 = pneg %p243
      %p250 = scmp.eq.s32.totalorder %s19, 1
      %p251 = por %p249, %p250
      %p252 = scmp.ne.s32.totalorder %s244, %s247
      %p253 = scmp.eq.s32.totalorder %s19, 0
      %p254 = por %p252, %p253
      %p255 = scmp.ne.s32.totalorder %s244, %s247
      %p256 = scmp.eq.s32.totalorder %s24, 1
      %p257 = por %p255, %p256
      %p258 = scmp.ne.s32.totalorder %s247, %s248
      %p259 = scmp.eq.s32.totalorder %s24, 0
      %p260 = por %p258, %p259
      %p261 = scmp.ne.s32.totalorder %s247, %s248
      %p262 = scmp.eq.s32.totalorder %s25, 1
      %p263 = por %p261, %p262
      %p265 = scmp.ne.s32.totalorder %s248, %s264
      %p266 = scmp.eq.s32.totalorder %s25, 0
      %p267 = por %p265, %p266
      %p268 = scmp.le.s32.totalorder 1, %s19
      %p269 = scmp.lt.s32.totalorder %s19, 3
      %p270 = pnand %p268, %p269
      %p271 = pneg %p270
      // Predicated region
      $region9: #{front_forward.1} parent=5 // pred_check
        _
      $region10: #{front_forward.1} parent=5 // pred_check_branch
        %273 = sbr.rel (%p270) target = $region12
      $region11: #{front_forward.1} parent=5 // pred_region
        %s274 = ssub.s32 %s19, 1
        // Predicated region
        $region13: #{front_forward.1} parent=11 // pred_check
          %p275 = pneg %p66
        $region14: #{front_forward.1} parent=11 // pred_check_branch
          %277 = sbr.rel (%p275) target = $region16
        $region15: #{front_forward.1} parent=11 // pred_region
          _
        $region16: #{front_forward.1} parent=11 // pred_fallthru
          _
        // Predicated region
        $region17: #{front_forward.1} parent=11 // pred_check
          %p278 = pneg %p87
        $region18: #{front_forward.1} parent=11 // pred_check_branch
          %280 = sbr.rel (%p278) target = $region20
        $region19: #{front_forward.1} parent=11 // pred_region
          _
        $region20: #{front_forward.1} parent=11 // pred_fallthru
          _
        // Predicated region
        $region21: #{front_forward.1} parent=11 // pred_check
          %p281 = pneg %p108
        $region22: #{front_forward.1} parent=11 // pred_check_branch
          %283 = sbr.rel (%p281) target = $region24
        $region23: #{front_forward.1} parent=11 // pred_region
          _
        $region24: #{front_forward.1} parent=11 // pred_fallthru
          _
        // Predicated region
        $region25: #{front_forward.1} parent=11 // pred_check
          %p284 = pneg %p129
        $region26: #{front_forward.1} parent=11 // pred_check_branch
          %286 = sbr.rel (%p284) target = $region28
        $region27: #{front_forward.1} parent=11 // pred_region
          _
        $region28: #{front_forward.1} parent=11 // pred_fallthru
          _
        // Predicated region
        $region29: #{front_forward.1} parent=11 // pred_check
          %p287 = pneg %p150
        $region30: #{front_forward.1} parent=11 // pred_check_branch
          %289 = sbr.rel (%p287) target = $region32
        $region31: #{front_forward.1} parent=11 // pred_region
          _
        $region32: #{front_forward.1} parent=11 // pred_fallthru
          _
        // Predicated region
        $region33: #{front_forward.1} parent=11 // pred_check
          %p290 = pneg %p171
        $region34: #{front_forward.1} parent=11 // pred_check_branch
          %292 = sbr.rel (%p290) target = $region36
        $region35: #{front_forward.1} parent=11 // pred_region
          _
        $region36: #{front_forward.1} parent=11 // pred_fallthru
          _
        // Predicated region
        $region37: #{front_forward.1} parent=11 // pred_check
          %p293 = pneg %p192
        $region38: #{front_forward.1} parent=11 // pred_check_branch
          %295 = sbr.rel (%p293) target = $region40
        $region39: #{front_forward.1} parent=11 // pred_region
          _
        $region40: #{front_forward.1} parent=11 // pred_fallthru
          _
        // Predicated region
        $region41: #{front_forward.1} parent=11 // pred_check
          %p296 = pneg %p213
        $region42: #{front_forward.1} parent=11 // pred_check_branch
          %298 = sbr.rel (%p296) target = $region44
        $region43: #{front_forward.1} parent=11 // pred_region
          _
        $region44: #{front_forward.1} parent=11 // pred_fallthru
          _
        // Predicated region
        $region45: #{front_forward.1} parent=11 // pred_check
          %p299 = pneg %p234
        $region46: #{front_forward.1} parent=11 // pred_check_branch
          %301 = sbr.rel (%p299) target = $region48
        $region47: #{front_forward.1} parent=11 // pred_region
          _
        $region48: #{front_forward.1} parent=11 // pred_fallthru
          _
      $region12: #{front_forward.1} parent=5 // pred_fallthru
        _
      %p302 = scmp.lt.s32.totalorder %s19, 2
      // Predicated region
      $region49: #{front_forward.1} parent=5 // pred_check
        %p303 = pneg %p302
      $region50: #{front_forward.1} parent=5 // pred_check_branch
        %305 = sbr.rel (%p303) target = $region52
      $region51: #{front_forward.1} parent=5 // pred_region
        // Predicated region
        $region53: #{front_forward.1} parent=51 // pred_check
          %p306 = pneg %p39
        $region54: #{front_forward.1} parent=51 // pred_check_branch
          %308 = sbr.rel (%p306) target = $region56
        $region55: #{front_forward.1} parent=51 // pred_region
          %p309 = scmp.lt.s32.totalorder %s19, 1
          %s310 = scalar_select %p309, %s19, 1
          %s311 = smul.addr %s310, 18
          %s312 = smul.addr %s311, 4
          %s313 = scalar_lea.vmem %s0, %s312
        $region56: #{front_forward.1} parent=51 // pred_fallthru
          _
      $region52: #{front_forward.1} parent=5 // pred_fallthru
        _
      %p314 = scmp.le.s32.totalorder 1, %s19
      %p315 = scmp.lt.s32.totalorder %s19, 3
      %p316 = pnand %p314, %p315
      %p317 = pneg %p316
      // Predicated region
      $region57: #{front_forward.1} parent=5 // pred_check
        _
      $region58: #{front_forward.1} parent=5 // pred_check_branch
        %319 = sbr.rel (%p316) target = $region60
      $region59: #{front_forward.1} parent=5 // pred_region
        %s320 = ssub.s32 %s19, 1
        %p321 = scmp.lt.s32.totalorder %s24, 1
        %s322 = scalar_select %p321, %s24, 1
        %s323 = smul.addr %s322, 18
        %s324 = smul.addr %s323, 4
        %s325 = scalar_lea.vmem %s0, %s324
        %p326 = pneg %p45
        %p327 = pneg %p42
        %p328 = pneg %p66
        %p329 = pneg %p63
        %p330 = pneg %p87
        %p331 = pneg %p84
        %p332 = pneg %p108
        %p333 = pneg %p105
        %p334 = pneg %p129
        %p335 = pneg %p126
        %p336 = pneg %p150
        %p337 = pneg %p147
        %p338 = pneg %p171
        %p339 = pneg %p168
        %p340 = pneg %p192
        %p341 = pneg %p189
        %p342 = pneg %p213
        %p343 = pneg %p210
        %p344 = pneg %p234
        %p345 = pneg %p231
        %p346 = pneg %p260
        %p347 = pneg %p257
        %s348 = sand.u32 %s247, 1
        %s349 = scalar_lea.sflag [#allocation7], %s348
        %s350 = sand.u32 %s247, 1
        %s351 = smul.addr %s350, 16
        %s352 = scalar_lea.vmem [#allocation6], %s351
        %p353 = scmp.lt.s32.totalorder %s24, 1
        %s354 = scalar_select %p353, %s24, 1
        %s355 = smul.addr %s354, 18
        %s356 = smul.addr %s355, 4
        %s357 = scalar_lea.vmem %s0, %s356
        %v359 = vld [vmem:[%s357] sm:$0xf]
        %v360 = vld [vmem:[%s357 + $0x4] sm:$0x1]
        %v361 = vld [vmem:[%s357 + $0x8] sm:$0xf]
        %v362 = vld [vmem:[%s357 + $0xc] sm:$0x1]
        %v363 = vld [vmem:[%s357 + $0x10] sm:$0xf]
        %v364 = vld [vmem:[%s357 + $0x14] sm:$0x1]
        %v365 = vld [vmem:[%s357 + $0x18] sm:$0xf]
        %v366 = vld [vmem:[%s357 + $0x1c] sm:$0x1]
        %v367 = vld [vmem:[%s357 + $0x20] sm:$0xf]
        %v368 = vld [vmem:[%s357 + $0x24] sm:$0x1]
        %v369 = vld [vmem:[%s357 + $0x28] sm:$0xf]
        %v370 = vld [vmem:[%s357 + $0x2c] sm:$0x1]
        %v371 = vld [vmem:[%s357 + $0x30] sm:$0xf]
        %v372 = vld [vmem:[%s357 + $0x34] sm:$0x1]
        %v373 = vld [vmem:[%s357 + $0x38] sm:$0xf]
        %v374 = vld [vmem:[%s357 + $0x3c] sm:$0x1]
        %v375 = vld [vmem:[%s357 + $0x40] sm:$0xf]
        %v376 = vld [vmem:[%s357 + $0x44] sm:$0x1]
        %v385 = vunpack.c.l.b16 %v359
        %v386 = vunpack.c.l.b16 %v361
        %v387 = vunpack.c.l.b16 %v363
        %v388 = vunpack.c.l.b16 %v365
        %v389 = vunpack.c.l.b16 %v367
        %v390 = vunpack.c.l.b16 %v369
        %v391 = vunpack.c.l.b16 %v371
        %v392 = vunpack.c.l.b16 %v373
        %v393 = vpack.c.b16 %v386, %v385
        %v394 = vpack.c.b16 %v388, %v387
        %v395 = vpack.c.b16 %v390, %v389
        %v396 = vpack.c.b16 %v392, %v391
        %vm401 = vcmask 97280
        %402 = vst.msk [vmem:[#allocation5] sm:$0xff] %vm401, %v393
        %403 = vst.msk [vmem:[#allocation5 + $0x18] sm:$0xff] %vm401, %v394
        %404 = vst.msk [vmem:[#allocation5 + $0x30] sm:$0xff] %vm401, %v395
        %405 = vst.msk [vmem:[#allocation5 + $0x48] sm:$0xff] %vm401, %v396
        %vm406 = vsmask.f32 3328
        %vm407 = vsmask.f32 7440
        %vm408 = vmor %vm406, %vm407
        %v410 = vshrl.u32 %v359, 16
        %v412 = vrot.slane %v410, 4
        %v413 = vshll.u32 %v359, 16
        %v415 = vrot.slane %v413, 5
        %v416 = vor.u32 %v412, %v415
        %v417 = vrot.slane %v416, 4
        %v419 = vshll.u32 %v360, 16
        %v421 = vrot.slane %v419, 5
        %v422 = vsel %vm408, %v417, %v421
        %v424 = vshrl.u32 %v361, 16
        %v426 = vrot.slane %v424, 4
        %v427 = vshll.u32 %v361, 16
        %v429 = vrot.slane %v427, 5
        %v430 = vor.u32 %v426, %v429
        %v431 = vrot.slane %v430, 4
        %v433 = vshll.u32 %v362, 16
        %v435 = vrot.slane %v433, 5
        %v436 = vsel %vm408, %v431, %v435
        %v438 = vshrl.u32 %v363, 16
        %v440 = vrot.slane %v438, 4
        %v441 = vshll.u32 %v363, 16
        %v443 = vrot.slane %v441, 5
        %v444 = vor.u32 %v440, %v443
        %v445 = vrot.slane %v444, 4
        %v447 = vshll.u32 %v364, 16
        %v449 = vrot.slane %v447, 5
        %v450 = vsel %vm408, %v445, %v449
        %v452 = vshrl.u32 %v365, 16
        %v454 = vrot.slane %v452, 4
        %v455 = vshll.u32 %v365, 16
        %v457 = vrot.slane %v455, 5
        %v458 = vor.u32 %v454, %v457
        %v459 = vrot.slane %v458, 4
        %v461 = vshll.u32 %v366, 16
        %v463 = vrot.slane %v461, 5
        %v464 = vsel %vm408, %v459, %v463
        %v466 = vshrl.u32 %v367, 16
        %v468 = vrot.slane %v466, 4
        %v469 = vshll.u32 %v367, 16
        %v471 = vrot.slane %v469, 5
        %v472 = vor.u32 %v468, %v471
        %v473 = vrot.slane %v472, 4
        %v475 = vshll.u32 %v368, 16
        %v477 = vrot.slane %v475, 5
        %v478 = vsel %vm408, %v473, %v477
        %v480 = vshrl.u32 %v369, 16
        %v482 = vrot.slane %v480, 4
        %v483 = vshll.u32 %v369, 16
        %v485 = vrot.slane %v483, 5
        %v486 = vor.u32 %v482, %v485
        %v487 = vrot.slane %v486, 4
        %v489 = vshll.u32 %v370, 16
        %v491 = vrot.slane %v489, 5
        %v492 = vsel %vm408, %v487, %v491
        %v494 = vshrl.u32 %v371, 16
        %v496 = vrot.slane %v494, 4
        %v497 = vshll.u32 %v371, 16
        %v499 = vrot.slane %v497, 5
        %v500 = vor.u32 %v496, %v499
        %v501 = vrot.slane %v500, 4
        %v503 = vshll.u32 %v372, 16
        %v505 = vrot.slane %v503, 5
        %v506 = vsel %vm408, %v501, %v505
        %v508 = vshrl.u32 %v373, 16
        %v510 = vrot.slane %v508, 4
        %v511 = vshll.u32 %v373, 16
        %v513 = vrot.slane %v511, 5
        %v514 = vor.u32 %v510, %v513
        %v515 = vrot.slane %v514, 4
        %v517 = vshll.u32 %v374, 16
        %v519 = vrot.slane %v517, 5
        %v520 = vsel %vm408, %v515, %v519
        %v521 = vunpack.c.l.b16 %v422
        %v522 = vunpack.c.l.b16 %v436
        %v523 = vunpack.c.l.b16 %v450
        %v524 = vunpack.c.l.b16 %v464
        %v525 = vunpack.c.l.b16 %v478
        %v526 = vunpack.c.l.b16 %v492
        %v527 = vunpack.c.l.b16 %v506
        %v528 = vunpack.c.l.b16 %v520
        %v529 = vpack.c.b16 %v522, %v521
        %v530 = vpack.c.b16 %v524, %v523
        %v531 = vpack.c.b16 %v526, %v525
        %v532 = vpack.c.b16 %v528, %v527
        %533 = vrot.lane.b32.xlu0 %v529, 12
        %v534 = vpop.permute.xlu0 %533
        %535 = vrot.lane.b32.xlu0 %v530, 12
        %v536 = vpop.permute.xlu0 %535
        %537 = vrot.lane.b32.xlu0 %v531, 12
        %v538 = vpop.permute.xlu0 %537
        %539 = vrot.lane.b32.xlu0 %v532, 12
        %v540 = vpop.permute.xlu0 %539
        %vm545 = vcmask 195680
        %546 = vst.msk [vmem:[#allocation5] sm:$0xff] %vm545, %v534
        %547 = vst.msk [vmem:[#allocation5 + $0x18] sm:$0xff] %vm545, %v536
        %548 = vst.msk [vmem:[#allocation5 + $0x30] sm:$0xff] %vm545, %v538
        %549 = vst.msk [vmem:[#allocation5 + $0x48] sm:$0xff] %vm545, %v540
        %v551 = vunpack.c.l.b16 %v375
        %v552 = vpack.c.b16 %v387, %v386
        %v553 = vpack.c.b16 %v389, %v388
        %v554 = vpack.c.b16 %v391, %v390
        %v555 = vpack.c.b16 %v551, %v392
        %556 = vrot.lane.b32.xlu0 %v552, 24
        %v557 = vpop.permute.xlu0 %556
        %558 = vrot.lane.b32.xlu0 %v553, 24
        %v559 = vpop.permute.xlu0 %558
        %560 = vrot.lane.b32.xlu0 %v554, 24
        %v561 = vpop.permute.xlu0 %560
        %562 = vrot.lane.b32.xlu0 %v555, 24
        %v563 = vpop.permute.xlu0 %562
        %vm568 = vcmask 294080
        %569 = vst.msk [vmem:[#allocation5] sm:$0xff] %vm568, %v557
        %570 = vst.msk [vmem:[#allocation5 + $0x18] sm:$0xff] %vm568, %v559
        %571 = vst.msk [vmem:[#allocation5 + $0x30] sm:$0xff] %vm568, %v561
        %572 = vst.msk [vmem:[#allocation5 + $0x48] sm:$0xff] %vm568, %v563
        %v574 = vshrl.u32 %v375, 16
        %v576 = vrot.slane %v574, 4
        %v577 = vshll.u32 %v375, 16
        %v579 = vrot.slane %v577, 5
        %v580 = vor.u32 %v576, %v579
        %v581 = vrot.slane %v580, 4
        %v583 = vshll.u32 %v376, 16
        %v585 = vrot.slane %v583, 5
        %v586 = vsel %vm408, %v581, %v585
        %v587 = vunpack.c.l.b16 %v586
        %v588 = vpack.c.b16 %v523, %v522
        %v589 = vpack.c.b16 %v525, %v524
        %v590 = vpack.c.b16 %v527, %v526
        %v591 = vpack.c.b16 %v587, %v528
        %592 = vrot.lane.b32.xlu0 %v588, 36
        %v593 = vpop.permute.xlu0 %592
        %594 = vrot.lane.b32.xlu0 %v589, 36
        %v595 = vpop.permute.xlu0 %594
        %596 = vrot.lane.b32.xlu0 %v590, 36
        %v597 = vpop.permute.xlu0 %596
        %598 = vrot.lane.b32.xlu0 %v591, 36
        %v599 = vpop.permute.xlu0 %598
        %vm604 = vcmask 392480
        %605 = vst.msk [vmem:[#allocation5] sm:$0xff] %vm604, %v593
        %606 = vst.msk [vmem:[#allocation5 + $0x18] sm:$0xff] %vm604, %v595
        %607 = vst.msk [vmem:[#allocation5 + $0x30] sm:$0xff] %vm604, %v597
        %608 = vst.msk [vmem:[#allocation5 + $0x48] sm:$0xff] %vm604, %v599
        %v609 = vld [vmem:[#allocation5] sm:$0xff]
        %v610 = vld [vmem:[#allocation5 + $0x18] sm:$0xff]
        %v611 = vld [vmem:[#allocation5 + $0x30] sm:$0xff]
        %v612 = vld [vmem:[#allocation5 + $0x48] sm:$0xff]
        %v613 = vld [vmem:[%s1] sm:$0xf]
        %v614 = vld [vmem:[%s1 + $0x4] sm:$0xf]
        %v615 = vld [vmem:[%s1 + $0x8] sm:$0xf]
        %v616 = vld [vmem:[%s1 + $0xc] sm:$0xf]
        %v617 = vld [vmem:[%s1 + $0x10] sm:$0xf]
        %v618 = vld [vmem:[%s1 + $0x14] sm:$0xf]
        %v625 = vunpack.c.l.b16 %v613
        %v626 = vunpack.c.l.b16 %v614
        %v627 = vunpack.c.l.b16 %v615
        %v628 = vunpack.c.l.b16 %v616
        %v629 = vunpack.c.l.b16 %v617
        %v630 = vunpack.c.l.b16 %v618
        %v631 = vpack.c.b16 %v626, %v625
        %v632 = vpack.c.b16 %v628, %v627
        %v633 = vpack.c.b16 %v630, %v629
        %vm637 = vcmask 392192
        %v639 = vsel %vm637, %v609, 0
        %v642 = vsel %vm637, %v610, 0
        %v645 = vsel %vm637, %v611, 0
        %v648 = vsel %vm637, %v612, 0
        %650 = vmatprep.subr.bf16.mxu0 0
        %651 = vmatpush1.bf16.msra.mxu0 %v631
        %652 = vmatprep.subr.bf16.mxu0 0
        %653 = vmatpush1.bf16.msra.mxu0 %v632
        %654 = vmatprep.subr.bf16.mxu0 0
        %655 = vmatpush1.bf16.msra.mxu0 %v633
        %656 = vmatprep.subr.bf16.mxu0 0
        %657 = vmatpush1.bf16.msra.mxu0 0
        %658 = vmatprep.subr.bf16.mxu0 0
        %659 = vmatpush1.bf16.msra.mxu0 0
        %660 = vmatprep.subr.bf16.mxu0 0
        %661 = vmatpush1.bf16.msra.mxu0 0
        %662 = vmatprep.subr.bf16.mxu0 0
        %663 = vmatpush1.bf16.msra.mxu0 0
        %664 = vmatprep.subr.bf16.mxu0 0
        %665 = vmatpush1.bf16.msra.mxu0 0
        %666 = vmatprep.subr.bf16.mxu0 0
        %667 = vmatpush1.bf16.msra.mxu0 0
        %668 = vmatprep.subr.bf16.mxu0 0
        %669 = vmatpush1.bf16.msra.mxu0 0
        %670 = vmatprep.subr.bf16.mxu0 0
        %671 = vmatpush1.bf16.msra.mxu0 0
        %672 = vmatprep.subr.bf16.mxu0 0
        %673 = vmatpush1.bf16.msra.mxu0 0
        %674 = vmatprep.subr.bf16.mxu0 0
        %675 = vmatpush1.bf16.msra.mxu0 0
        %676 = vmatprep.subr.bf16.mxu0 0
        %677 = vmatpush1.bf16.msra.mxu0 0
        %678 = vmatprep.subr.bf16.mxu0 0
        %679 = vmatpush1.bf16.msra.mxu0 0
        %680 = vmatprep.subr.bf16.mxu0 0
        %681 = vmatpush1.bf16.msra.mxu0 0
        %682 = vmatprep.mubr.bf16.mxu0 0
        %683 = vmatmul.mubr.bf16.gmra.mrb[0].mxu0 %v639
        %v684 = vpop.f32.mrb[0].mxu0
        %v685 = vadd.f32 0.0, %v684
        %v686 = vpop.f32.mrb[0].mxu0
        %v687 = vpop.f32.mrb[0].mxu0
        %v688 = vadd.f32 0.0, %v687
        %v689 = vpop.f32.mrb[0].mxu0
        %690 = vmatprep.mubr.bf16.mxu0 0
        %691 = vmatmul.mubr.bf16.gmra.mrb[0].mxu0 %v642
        %v692 = vpop.f32.mrb[0].mxu0
        %v693 = vadd.f32 0.0, %v692
        %v694 = vpop.f32.mrb[0].mxu0
        %v695 = vpop.f32.mrb[0].mxu0
        %v696 = vadd.f32 0.0, %v695
        %v697 = vpop.f32.mrb[0].mxu0
        %698 = vmatprep.mubr.bf16.mxu0 0
        %699 = vmatmul.mubr.bf16.gmra.mrb[0].mxu0 %v645
        %v700 = vpop.f32.mrb[0].mxu0
        %v701 = vadd.f32 0.0, %v700
        %v702 = vpop.f32.mrb[0].mxu0
        %v703 = vpop.f32.mrb[0].mxu0
        %v704 = vadd.f32 0.0, %v703
        %v705 = vpop.f32.mrb[0].mxu0
        %706 = vmatprep.mubr.bf16.mxu0 0
        %707 = vmatmul.mubr.bf16.gmra.mrb[0].mxu0 %v648
        %v708 = vpop.f32.mrb[0].mxu0
        %v709 = vadd.f32 0.0, %v708
        %v710 = vpop.f32.mrb[0].mxu0
        %v711 = vpop.f32.mrb[0].mxu0
        %v712 = vadd.f32 0.0, %v711
        %v713 = vpop.f32.mrb[0].mxu0
        %714 = vdwg.mxu0
        %v715 = vld [vmem:[%s2] sm:$0x1]
        %v717 = vlaneseq
        %v718 = vshrl.u32 %v717, 7
        %v719 = vsub.s32 0, %v718
        %v720 = vrot.slane %v715, %v719
        %v722 = vmul.f32 %v685, %v720
        %v723 = vmul.f32 %v688, %v720
        %v724 = vmul.f32 %v693, %v720
        %v725 = vmul.f32 %v696, %v720
        %v726 = vmul.f32 %v701, %v720
        %v727 = vmul.f32 %v704, %v720
        %v728 = vmul.f32 %v709, %v720
        %v729 = vmul.f32 %v712, %v720
        %v730 = vld [vmem:[%s3] sm:$0x1]
        %v732 = vlaneseq
        %v733 = vshrl.u32 %v732, 7
        %v734 = vsub.s32 0, %v733
        %v735 = vrot.slane %v730, %v734
        %v737 = vadd.f32 %v722, %v735
        %v738 = vadd.f32 %v723, %v735
        %v739 = vadd.f32 %v724, %v735
        %v740 = vadd.f32 %v725, %v735
        %v741 = vadd.f32 %v726, %v735
        %v742 = vadd.f32 %v727, %v735
        %v743 = vadd.f32 %v728, %v735
        %v744 = vadd.f32 %v729, %v735
        %v745 = vmax.f32 %v737, 0.0
        %v746 = vmax.f32 %v738, 0.0
        %v747 = vmax.f32 %v739, 0.0
        %v748 = vmax.f32 %v740, 0.0
        %v749 = vmax.f32 %v741, 0.0
        %v750 = vmax.f32 %v742, 0.0
        %v751 = vmax.f32 %v743, 0.0
        %v752 = vmax.f32 %v744, 0.0
        %v753 = vpack.c.bf16 %v745, %v745
        %v754 = vpack.c.bf16 %v746, %v746
        %v755 = vpack.c.bf16 %v747, %v747
        %v756 = vpack.c.bf16 %v748, %v748
        %v757 = vpack.c.bf16 %v749, %v749
        %v758 = vpack.c.bf16 %v750, %v750
        %v759 = vpack.c.bf16 %v751, %v751
        %v760 = vpack.c.bf16 %v752, %v752
        %v762 = vshrl.u32 %v753, 16
        %v764 = vrot.slane %v762, 7
        %v765 = vshll.u32 %v753, 16
        %v767 = vor.u32 %v764, %v765
        %v769 = vshrl.u32 %v754, 16
        %v771 = vrot.slane %v769, 7
        %v772 = vshll.u32 %v754, 16
        %v774 = vor.u32 %v771, %v772
        %v776 = vshrl.u32 %v755, 16
        %v778 = vrot.slane %v776, 7
        %v779 = vshll.u32 %v755, 16
        %v781 = vor.u32 %v778, %v779
        %v783 = vshrl.u32 %v756, 16
        %v785 = vrot.slane %v783, 7
        %v786 = vshll.u32 %v756, 16
        %v788 = vor.u32 %v785, %v786
        %v790 = vshrl.u32 %v757, 16
        %v792 = vrot.slane %v790, 7
        %v793 = vshll.u32 %v757, 16
        %v795 = vor.u32 %v792, %v793
        %v797 = vshrl.u32 %v758, 16
        %v799 = vrot.slane %v797, 7
        %v800 = vshll.u32 %v758, 16
        %v802 = vor.u32 %v799, %v800
        %v804 = vshrl.u32 %v759, 16
        %v806 = vrot.slane %v804, 7
        %v807 = vshll.u32 %v759, 16
        %v809 = vor.u32 %v806, %v807
        %v811 = vshrl.u32 %v760, 16
        %v813 = vrot.slane %v811, 7
        %v814 = vshll.u32 %v760, 16
        %v816 = vor.u32 %v813, %v814
        %vm825 = vcmask 1040384
        %vm826 = vsmask.f32 256
        %vm827 = vmand %vm825, %vm826
        %v828 = vsel %vm827, 0, %v767
        %v829 = vsel %vm827, 0, %v774
        %v830 = vsel %vm827, 0, %v781
        %v831 = vsel %vm827, 0, %v788
        %v832 = vsel %vm827, 0, %v795
        %v833 = vsel %vm827, 0, %v802
        %v834 = vsel %vm827, 0, %v809
        %v835 = vsel %vm827, 0, %v816
        %vm836 = vcmask 1044480
        %vm837 = vsmask.f32 4352
        %vm838 = vmand %vm836, %vm837
        %v839 = vsel %vm838, %v828, 0
        %v840 = vsel %vm838, %v829, 0
        %v841 = vsel %vm838, %v830, 0
        %v842 = vsel %vm838, %v831, 0
        %v843 = vsel %vm838, %v832, 0
        %v844 = vsel %vm838, %v833, 0
        %v845 = vsel %vm838, %v834, 0
        %v846 = vsel %vm838, %v835, 0
        %v855 = vunpack.c.l.b16 %v839
        %v856 = vunpack.c.h.b16 %v839
        %v857 = vunpack.c.l.b16 %v840
        %v858 = vunpack.c.h.b16 %v840
        %v859 = vunpack.c.l.b16 %v841
        %v860 = vunpack.c.h.b16 %v841
        %v861 = vunpack.c.l.b16 %v842
        %v862 = vunpack.c.h.b16 %v842
        %v863 = vunpack.c.l.b16 %v843
        %v864 = vunpack.c.h.b16 %v843
        %v865 = vunpack.c.l.b16 %v844
        %v866 = vunpack.c.h.b16 %v844
        %v867 = vunpack.c.l.b16 %v845
        %v868 = vunpack.c.h.b16 %v845
        %v869 = vunpack.c.l.b16 %v846
        %v870 = vunpack.c.h.b16 %v846
        %v871 = vpack.c.b16 %v855, %v855
        %v872 = vpack.c.b16 %v856, %v856
        %v873 = vpack.c.b16 %v857, %v857
        %v874 = vpack.c.b16 %v858, %v858
        %v875 = vpack.c.b16 %v859, %v859
        %v876 = vpack.c.b16 %v860, %v860
        %v877 = vpack.c.b16 %v861, %v861
        %v878 = vpack.c.b16 %v862, %v862
        %v879 = vpack.c.b16 %v863, %v863
        %v880 = vpack.c.b16 %v864, %v864
        %v881 = vpack.c.b16 %v865, %v865
        %v882 = vpack.c.b16 %v866, %v866
        %v883 = vpack.c.b16 %v867, %v867
        %v884 = vpack.c.b16 %v868, %v868
        %v885 = vpack.c.b16 %v869, %v869
        %v886 = vpack.c.b16 %v870, %v870
        %s903 = scalar_lea.vmem [#allocation2], 8
        %vm904 = vcmask 257024
        %905 = vst.msk [vmem:[%s903] sm:$0xf] %vm904, %v871
        %vm906 = vcmask 253952
        %907 = vst.msk [vmem:[%s903 + $0x4] sm:$0x1] %vm906, %v872
        %908 = vst.msk [vmem:[%s903 + $0x8] sm:$0xf] %vm904, %v873
        %909 = vst.msk [vmem:[%s903 + $0xc] sm:$0x1] %vm906, %v874
        %910 = vst.msk [vmem:[%s903 + $0x10] sm:$0xf] %vm904, %v875
        %911 = vst.msk [vmem:[%s903 + $0x14] sm:$0x1] %vm906, %v876
        %912 = vst.msk [vmem:[%s903 + $0x18] sm:$0xf] %vm904, %v877
        %913 = vst.msk [vmem:[%s903 + $0x1c] sm:$0x1] %vm906, %v878
        %914 = vst.msk [vmem:[%s903 + $0x20] sm:$0xf] %vm904, %v879
        %915 = vst.msk [vmem:[%s903 + $0x24] sm:$0x1] %vm906, %v880
        %916 = vst.msk [vmem:[%s903 + $0x28] sm:$0xf] %vm904, %v881
        %917 = vst.msk [vmem:[%s903 + $0x2c] sm:$0x1] %vm906, %v882
        %918 = vst.msk [vmem:[%s903 + $0x30] sm:$0xf] %vm904, %v883
        %919 = vst.msk [vmem:[%s903 + $0x34] sm:$0x1] %vm906, %v884
        %920 = vst.msk [vmem:[%s903 + $0x38] sm:$0xf] %vm904, %v885
        %921 = vst.msk [vmem:[%s903 + $0x3c] sm:$0x1] %vm906, %v886
        %922 = vst.msk [vmem:[#allocation2] sm:$0xf] %vm904, 0
        %923 = vst.msk [vmem:[#allocation2 + $0x4] sm:$0x1] %vm906, 0
        %s924 = scalar_lea.vmem [#allocation2], 72
        %925 = vst.msk [vmem:[%s924] sm:$0xf] %vm904, 0
        %926 = vst.msk [vmem:[%s924 + $0x4] sm:$0x1] %vm906, 0
        %v927 = vld [vmem:[#allocation2] sm:$0xf]
        %v928 = vld [vmem:[#allocation2 + $0x4] sm:$0x1]
        %v929 = vld [vmem:[#allocation2 + $0x8] sm:$0xf]
        %v930 = vld [vmem:[#allocation2 + $0xc] sm:$0x1]
        %v931 = vld [vmem:[#allocation2 + $0x10] sm:$0xf]
        %v932 = vld [vmem:[#allocation2 + $0x14] sm:$0x1]
        %v933 = vld [vmem:[#allocation2 + $0x18] sm:$0xf]
        %v934 = vld [vmem:[#allocation2 + $0x1c] sm:$0x1]
        %v935 = vld [vmem:[#allocation2 + $0x20] sm:$0xf]
        %v936 = vld [vmem:[#allocation2 + $0x24] sm:$0x1]
        %v937 = vld [vmem:[#allocation2 + $0x28] sm:$0xf]
        %v938 = vld [vmem:[#allocation2 + $0x2c] sm:$0x1]
        %v939 = vld [vmem:[#allocation2 + $0x30] sm:$0xf]
        %v940 = vld [vmem:[#allocation2 + $0x34] sm:$0x1]
        %v941 = vld [vmem:[#allocation2 + $0x38] sm:$0xf]
        %v942 = vld [vmem:[#allocation2 + $0x3c] sm:$0x1]
        %v943 = vld [vmem:[#allocation2 + $0x40] sm:$0xf]
        %v944 = vld [vmem:[#allocation2 + $0x44] sm:$0x1]
        %v945 = vld [vmem:[#allocation2 + $0x48] sm:$0xf]
        %v946 = vld [vmem:[#allocation2 + $0x4c] sm:$0x1]
        %v955 = vunpack.c.l.b16 %v927
        %v956 = vunpack.c.l.b16 %v929
        %v957 = vunpack.c.l.b16 %v931
        %v958 = vunpack.c.l.b16 %v933
        %v959 = vunpack.c.l.b16 %v935
        %v960 = vunpack.c.l.b16 %v937
        %v961 = vunpack.c.l.b16 %v939
        %v962 = vunpack.c.l.b16 %v941
        %v963 = vpack.c.b16 %v956, %v955
        %v964 = vpack.c.b16 %v958, %v957
        %v965 = vpack.c.b16 %v960, %v959
        %v966 = vpack.c.b16 %v962, %v961
        %vm971 = vcmask 261120
        %972 = vst.msk [vmem:[#allocation5] sm:$0xff] %vm971, %v963
        %973 = vst.msk [vmem:[#allocation5 + $0x18] sm:$0xff] %vm971, %v964
        %974 = vst.msk [vmem:[#allocation5 + $0x30] sm:$0xff] %vm971, %v965
        %975 = vst.msk [vmem:[#allocation5 + $0x48] sm:$0xff] %vm971, %v966
        %v977 = vshrl.u32 %v927, 16
        %v979 = vrot.slane %v977, 4
        %v980 = vshll.u32 %v927, 16
        %v982 = vrot.slane %v980, 5
        %v983 = vor.u32 %v979, %v982
        %v984 = vrot.slane %v983, 4
        %v986 = vshll.u32 %v928, 16
        %v988 = vrot.slane %v986, 5
        %v989 = vsel %vm408, %v984, %v988
        %v991 = vshrl.u32 %v929, 16
        %v993 = vrot.slane %v991, 4
        %v994 = vshll.u32 %v929, 16
        %v996 = vrot.slane %v994, 5
        %v997 = vor.u32 %v993, %v996
        %v998 = vrot.slane %v997, 4
        %v1000 = vshll.u32 %v930, 16
        %v1002 = vrot.slane %v1000, 5
        %v1003 = vsel %vm408, %v998, %v1002
        %v1005 = vshrl.u32 %v931, 16
        %v1007 = vrot.slane %v1005, 4
        %v1008 = vshll.u32 %v931, 16
        %v1010 = vrot.slane %v1008, 5
        %v1011 = vor.u32 %v1007, %v1010
        %v1012 = vrot.slane %v1011, 4
        %v1014 = vshll.u32 %v932, 16
        %v1016 = vrot.slane %v1014, 5
        %v1017 = vsel %vm408, %v1012, %v1016
        %v1019 = vshrl.u32 %v933, 16
        %v1021 = vrot.slane %v1019, 4
        %v1022 = vshll.u32 %v933, 16
        %v1024 = vrot.slane %v1022, 5
        %v1025 = vor.u32 %v1021, %v1024
        %v1026 = vrot.slane %v1025, 4
        %v1028 = vshll.u32 %v934, 16
        %v1030 = vrot.slane %v1028, 5
        %v1031 = vsel %vm408, %v1026, %v1030
        %v1033 = vshrl.u32 %v935, 16
        %v1035 = vrot.slane %v1033, 4
        %v1036 = vshll.u32 %v935, 16
        %v1038 = vrot.slane %v1036, 5
        %v1039 = vor.u32 %v1035, %v1038
        %v1040 = vrot.slane %v1039, 4
        %v1042 = vshll.u32 %v936, 16
        %v1044 = vrot.slane %v1042, 5
        %v1045 = vsel %vm408, %v1040, %v1044
        %v1047 = vshrl.u32 %v937, 16
        %v1049 = vrot.slane %v1047, 4
        %v1050 = vshll.u32 %v937, 16
        %v1052 = vrot.slane %v1050, 5
        %v1053 = vor.u32 %v1049, %v1052
        %v1054 = vrot.slane %v1053, 4
        %v1056 = vshll.u32 %v938, 16
        %v1058 = vrot.slane %v1056, 5
        %v1059 = vsel %vm408, %v1054, %v1058
        %v1061 = vshrl.u32 %v939, 16
        %v1063 = vrot.slane %v1061, 4
        %v1064 = vshll.u32 %v939, 16
        %v1066 = vrot.slane %v1064, 5
        %v1067 = vor.u32 %v1063, %v1066
        %v1068 = vrot.slane %v1067, 4
        %v1070 = vshll.u32 %v940, 16
        %v1072 = vrot.slane %v1070, 5
        %v1073 = vsel %vm408, %v1068, %v1072
        %v1075 = vshrl.u32 %v941, 16
        %v1077 = vrot.slane %v1075, 4
        %v1078 = vshll.u32 %v941, 16
        %v1080 = vrot.slane %v1078, 5
        %v1081 = vor.u32 %v1077, %v1080
        %v1082 = vrot.slane %v1081, 4
        %v1084 = vshll.u32 %v942, 16
        %v1086 = vrot.slane %v1084, 5
        %v1087 = vsel %vm408, %v1082, %v1086
        %v1088 = vunpack.c.l.b16 %v989
        %v1089 = vunpack.c.l.b16 %v1003
        %v1090 = vunpack.c.l.b16 %v1017
        %v1091 = vunpack.c.l.b16 %v1031
        %v1092 = vunpack.c.l.b16 %v1045
        %v1093 = vunpack.c.l.b16 %v1059
        %v1094 = vunpack.c.l.b16 %v1073
        %v1095 = vunpack.c.l.b16 %v1087
        %v1096 = vpack.c.b16 %v1089, %v1088
        %v1097 = vpack.c.b16 %v1091, %v1090
        %v1098 = vpack.c.b16 %v1093, %v1092
        %v1099 = vpack.c.b16 %v1095, %v1094
        %1100 = vrot.lane.b32.xlu0 %v1096, 32
        %v1101 = vpop.permute.xlu0 %1100
        %1102 = vrot.lane.b32.xlu0 %v1097, 32
        %v1103 = vpop.permute.xlu0 %1102
        %1104 = vrot.lane.b32.xlu0 %v1098, 32
        %v1105 = vpop.permute.xlu0 %1104
        %1106 = vrot.lane.b32.xlu0 %v1099, 32
        %v1107 = vpop.permute.xlu0 %1106
        %vm1112 = vcmask 523520
        %1113 = vst.msk [vmem:[#allocation5] sm:$0xff] %vm1112, %v1101
        %1114 = vst.msk [vmem:[#allocation5 + $0x18] sm:$0xff] %vm1112, %v1103
        %1115 = vst.msk [vmem:[#allocation5 + $0x30] sm:$0xff] %vm1112, %v1105
        %1116 = vst.msk [vmem:[#allocation5 + $0x48] sm:$0xff] %vm1112, %v1107
        %vm1125 = vcmask 1042432
        %vm1126 = vcmask 1046532
        %vm1127 = vmor %vm1125, %vm1126
        %v1128 = vrot.slane %v927, 5
        %v1129 = vrot.slane %v1128, 4
        %v1130 = vrot.slane %v928, 5
        %v1131 = vsel %vm1127, %v1129, %v1130
        %v1132 = vrot.slane %v929, 5
        %v1133 = vrot.slane %v1132, 4
        %v1134 = vrot.slane %v930, 5
        %v1135 = vsel %vm1127, %v1133, %v1134
        %v1136 = vrot.slane %v931, 5
        %v1137 = vrot.slane %v1136, 4
        %v1138 = vrot.slane %v932, 5
        %v1139 = vsel %vm1127, %v1137, %v1138
        %v1140 = vrot.slane %v933, 5
        %v1141 = vrot.slane %v1140, 4
        %v1142 = vrot.slane %v934, 5
        %v1143 = vsel %vm1127, %v1141, %v1142
        %v1144 = vrot.slane %v935, 5
        %v1145 = vrot.slane %v1144, 4
        %v1146 = vrot.slane %v936, 5
        %v1147 = vsel %vm1127, %v1145, %v1146
        %v1148 = vrot.slane %v937, 5
        %v1149 = vrot.slane %v1148, 4
        %v1150 = vrot.slane %v938, 5
        %v1151 = vsel %vm1127, %v1149, %v1150
        %v1152 = vrot.slane %v939, 5
        %v1153 = vrot.slane %v1152, 4
        %v1154 = vrot.slane %v940, 5
        %v1155 = vsel %vm1127, %v1153, %v1154
        %v1156 = vrot.slane %v941, 5
        %v1157 = vrot.slane %v1156, 4
        %v1158 = vrot.slane %v942, 5
        %v1159 = vsel %vm1127, %v1157, %v1158
        %v1160 = vunpack.c.l.b16 %v1131
        %v1161 = vunpack.c.l.b16 %v1135
        %v1162 = vunpack.c.l.b16 %v1139
        %v1163 = vunpack.c.l.b16 %v1143
        %v1164 = vunpack.c.l.b16 %v1147
        %v1165 = vunpack.c.l.b16 %v1151
        %v1166 = vunpack.c.l.b16 %v1155
        %v1167 = vunpack.c.l.b16 %v1159
        %v1168 = vpack.c.b16 %v1161, %v1160
        %v1169 = vpack.c.b16 %v1163, %v1162
        %v1170 = vpack.c.b16 %v1165, %v1164
        %v1171 = vpack.c.b16 %v1167, %v1166
        %1172 = vrot.lane.b32.xlu0 %v1168, 64
        %v1173 = vpop.permute.xlu0 %1172
        %1174 = vrot.lane.b32.xlu0 %v1169, 64
        %v1175 = vpop.permute.xlu0 %1174
        %1176 = vrot.lane.b32.xlu0 %v1170, 64
        %v1177 = vpop.permute.xlu0 %1176
        %1178 = vrot.lane.b32.xlu0 %v1171, 64
        %v1179 = vpop.permute.xlu0 %1178
        %vm1184 = vcmask 785920
        %1185 = vst.msk [vmem:[#allocation5] sm:$0xff] %vm1184, %v1173
        %1186 = vst.msk [vmem:[#allocation5 + $0x18] sm:$0xff] %vm1184, %v1175
        %1187 = vst.msk [vmem:[#allocation5 + $0x30] sm:$0xff] %vm1184, %v1177
        %1188 = vst.msk [vmem:[#allocation5 + $0x48] sm:$0xff] %vm1184, %v1179
        %v1190 = vunpack.c.l.b16 %v943
        %v1191 = vpack.c.b16 %v957, %v956
        %v1192 = vpack.c.b16 %v959, %v958
        %v1193 = vpack.c.b16 %v961, %v960
        %v1194 = vpack.c.b16 %v1190, %v962
        %1195 = vrot.lane.b32.xlu0 %v1191, 96
        %v1196 = vpop.permute.xlu0 %1195
        %1197 = vrot.lane.b32.xlu0 %v1192, 96
        %v1198 = vpop.permute.xlu0 %1197
        %1199 = vrot.lane.b32.xlu0 %v1193, 96
        %v1200 = vpop.permute.xlu0 %1199
        %1201 = vrot.lane.b32.xlu0 %v1194, 96
        %v1202 = vpop.permute.xlu0 %1201
        %vm1207 = vcmask 1048320
        %1208 = vst.msk [vmem:[#allocation5] sm:$0xff] %vm1207, %v1196
        %1209 = vst.msk [vmem:[#allocation5 + $0x18] sm:$0xff] %vm1207, %v1198
        %1210 = vst.msk [vmem:[#allocation5 + $0x30] sm:$0xff] %vm1207, %v1200
        %1211 = vst.msk [vmem:[#allocation5 + $0x48] sm:$0xff] %vm1207, %v1202
        %v1213 = vshrl.u32 %v943, 16
        %v1215 = vrot.slane %v1213, 4
        %v1216 = vshll.u32 %v943, 16
        %v1218 = vrot.slane %v1216, 5
        %v1219 = vor.u32 %v1215, %v1218
        %v1220 = vrot.slane %v1219, 4
        %v1222 = vshll.u32 %v944, 16
        %v1224 = vrot.slane %v1222, 5
        %v1225 = vsel %vm408, %v1220, %v1224
        %v1226 = vunpack.c.l.b16 %v1225
        %v1227 = vpack.c.b16 %v1090, %v1089
        %v1228 = vpack.c.b16 %v1092, %v1091
        %v1229 = vpack.c.b16 %v1094, %v1093
        %v1230 = vpack.c.b16 %v1226, %v1095
        %1235 = vst.msk [vmem:[#allocation5 + $0x8] sm:$0xff] %vm971, %v1227
        %1236 = vst.msk [vmem:[#allocation5 + $0x20] sm:$0xff] %vm971, %v1228
        %1237 = vst.msk [vmem:[#allocation5 + $0x38] sm:$0xff] %vm971, %v1229
        %1238 = vst.msk [vmem:[#allocation5 + $0x50] sm:$0xff] %vm971, %v1230
        %v1240 = vrot.slane %v943, 5
        %v1241 = vrot.slane %v1240, 4
        %v1242 = vrot.slane %v944, 5
        %v1243 = vsel %vm1127, %v1241, %v1242
        %v1244 = vunpack.c.l.b16 %v1243
        %v1245 = vpack.c.b16 %v1162, %v1161
        %v1246 = vpack.c.b16 %v1164, %v1163
        %v1247 = vpack.c.b16 %v1166, %v1165
        %v1248 = vpack.c.b16 %v1244, %v1167
        %1249 = vrot.lane.b32.xlu0 %v1245, 32
        %v1250 = vpop.permute.xlu0 %1249
        %1251 = vrot.lane.b32.xlu0 %v1246, 32
        %v1252 = vpop.permute.xlu0 %1251
        %1253 = vrot.lane.b32.xlu0 %v1247, 32
        %v1254 = vpop.permute.xlu0 %1253
        %1255 = vrot.lane.b32.xlu0 %v1248, 32
        %v1256 = vpop.permute.xlu0 %1255
        %1261 = vst.msk [vmem:[#allocation5 + $0x8] sm:$0xff] %vm1112, %v1250
        %1262 = vst.msk [vmem:[#allocation5 + $0x20] sm:$0xff] %vm1112, %v1252
        %1263 = vst.msk [vmem:[#allocation5 + $0x38] sm:$0xff] %vm1112, %v1254
        %1264 = vst.msk [vmem:[#allocation5 + $0x50] sm:$0xff] %vm1112, %v1256
        %v1266 = vunpack.c.l.b16 %v945
        %v1267 = vpack.c.b16 %v1266, %v1190
        %1268 = vrot.lane.b32.xlu0 %v964, 64
        %v1269 = vpop.permute.xlu0 %1268
        %1270 = vrot.lane.b32.xlu0 %v965, 64
        %v1271 = vpop.permute.xlu0 %1270
        %1272 = vrot.lane.b32.xlu0 %v966, 64
        %v1273 = vpop.permute.xlu0 %1272
        %1274 = vrot.lane.b32.xlu0 %v1267, 64
        %v1275 = vpop.permute.xlu0 %1274
        %1280 = vst.msk [vmem:[#allocation5 + $0x8] sm:$0xff] %vm1184, %v1269
        %1281 = vst.msk [vmem:[#allocation5 + $0x20] sm:$0xff] %vm1184, %v1271
        %1282 = vst.msk [vmem:[#allocation5 + $0x38] sm:$0xff] %vm1184, %v1273
        %1283 = vst.msk [vmem:[#allocation5 + $0x50] sm:$0xff] %vm1184, %v1275
        %v1285 = vshrl.u32 %v945, 16
        %v1287 = vrot.slane %v1285, 4
        %v1288 = vshll.u32 %v945, 16
        %v1290 = vrot.slane %v1288, 5
        %v1291 = vor.u32 %v1287, %v1290
        %v1292 = vrot.slane %v1291, 4
        %v1294 = vshll.u32 %v946, 16
        %v1296 = vrot.slane %v1294, 5
        %v1297 = vsel %vm408, %v1292, %v1296
        %v1298 = vunpack.c.l.b16 %v1297
        %v1299 = vpack.c.b16 %v1298, %v1226
        %1300 = vrot.lane.b32.xlu0 %v1097, 96
        %v1301 = vpop.permute.xlu0 %1300
        %1302 = vrot.lane.b32.xlu0 %v1098, 96
        %v1303 = vpop.permute.xlu0 %1302
        %1304 = vrot.lane.b32.xlu0 %v1099, 96
        %v1305 = vpop.permute.xlu0 %1304
        %1306 = vrot.lane.b32.xlu0 %v1299, 96
        %v1307 = vpop.permute.xlu0 %1306
        %1312 = vst.msk [vmem:[#allocation5 + $0x8] sm:$0xff] %vm1207, %v1301
        %1313 = vst.msk [vmem:[#allocation5 + $0x20] sm:$0xff] %vm1207, %v1303
        %1314 = vst.msk [vmem:[#allocation5 + $0x38] sm:$0xff] %vm1207, %v1305
        %1315 = vst.msk [vmem:[#allocation5 + $0x50] sm:$0xff] %vm1207, %v1307
        %v1317 = vrot.slane %v945, 5
        %v1318 = vrot.slane %v1317, 4
        %v1319 = vrot.slane %v946, 5
        %v1320 = vsel %vm1127, %v1318, %v1319
        %v1321 = vunpack.c.l.b16 %v1320
        %v1322 = vpack.c.b16 %v1321, %v1244
        %1327 = vst.msk [vmem:[#allocation5 + $0x10] sm:$0xff] %vm971, %v1169
        %1328 = vst.msk [vmem:[#allocation5 + $0x28] sm:$0xff] %vm971, %v1170
        %1329 = vst.msk [vmem:[#allocation5 + $0x40] sm:$0xff] %vm971, %v1171
        %1330 = vst.msk [vmem:[#allocation5 + $0x58] sm:$0xff] %vm971, %v1322
        %v1331 = vld [vmem:[#allocation5] sm:$0xff]
        %v1332 = vld [vmem:[#allocation5 + $0x8] sm:$0xff]
        %v1333 = vld [vmem:[#allocation5 + $0x10] sm:$0xff]
        %v1334 = vld [vmem:[#allocation5 + $0x18] sm:$0xff]
        %v1335 = vld [vmem:[#allocation5 + $0x20] sm:$0xff]
        %v1336 = vld [vmem:[#allocation5 + $0x28] sm:$0xff]
        %v1337 = vld [vmem:[#allocation5 + $0x30] sm:$0xff]
        %v1338 = vld [vmem:[#allocation5 + $0x38] sm:$0xff]
        %v1339 = vld [vmem:[#allocation5 + $0x40] sm:$0xff]
        %v1340 = vld [vmem:[#allocation5 + $0x48] sm:$0xff]
        %v1341 = vld [vmem:[#allocation5 + $0x50] sm:$0xff]
        %v1342 = vld [vmem:[#allocation5 + $0x58] sm:$0xff]
        %v1343 = vld [vmem:[%s4] sm:$0xf]
        %v1344 = vld [vmem:[%s4 + $0x4] sm:$0xf]
        %v1345 = vld [vmem:[%s4 + $0x8] sm:$0xf]
        %v1346 = vld [vmem:[%s4 + $0xc] sm:$0xf]
        %v1347 = vld [vmem:[%s4 + $0x10] sm:$0xf]
        %v1348 = vld [vmem:[%s4 + $0x14] sm:$0xf]
        %v1349 = vld [vmem:[%s4 + $0x18] sm:$0xf]
        %v1350 = vld [vmem:[%s4 + $0x1c] sm:$0xf]
        %v1351 = vld [vmem:[%s4 + $0x20] sm:$0xf]
        %v1352 = vld [vmem:[%s4 + $0x24] sm:$0xf]
        %v1353 = vld [vmem:[%s4 + $0x28] sm:$0xf]
        %v1354 = vld [vmem:[%s4 + $0x2c] sm:$0xf]
        %v1355 = vld [vmem:[%s4 + $0x30] sm:$0xf]
        %v1356 = vld [vmem:[%s4 + $0x34] sm:$0xf]
        %v1357 = vld [vmem:[%s4 + $0x38] sm:$0xf]
        %v1358 = vld [vmem:[%s4 + $0x3c] sm:$0xf]
        %v1359 = vld [vmem:[%s4 + $0x40] sm:$0xf]
        %v1360 = vld [vmem:[%s4 + $0x44] sm:$0xf]
        %v1361 = vld [vmem:[%s4 + $0x48] sm:$0xf]
        %v1362 = vld [vmem:[%s4 + $0x4c] sm:$0xf]
        %v1363 = vld [vmem:[%s4 + $0x50] sm:$0xf]
        %v1364 = vld [vmem:[%s4 + $0x54] sm:$0xf]
        %v1365 = vld [vmem:[%s4 + $0x58] sm:$0xf]
        %v1366 = vld [vmem:[%s4 + $0x5c] sm:$0xf]
        %v1367 = vld [vmem:[%s4 + $0x60] sm:$0xf]
        %v1368 = vld [vmem:[%s4 + $0x64] sm:$0xf]
        %v1369 = vld [vmem:[%s4 + $0x68] sm:$0xf]
        %v1370 = vld [vmem:[%s4 + $0x6c] sm:$0xf]
        %v1371 = vld [vmem:[%s4 + $0x70] sm:$0xf]
        %v1372 = vld [vmem:[%s4 + $0x74] sm:$0xf]
        %v1373 = vld [vmem:[%s4 + $0x78] sm:$0xf]
        %v1374 = vld [vmem:[%s4 + $0x7c] sm:$0xf]
        %v1375 = vld [vmem:[%s4 + $0x80] sm:$0xf]
        %v1376 = vld [vmem:[%s4 + $0x84] sm:$0xf]
        %v1377 = vld [vmem:[%s4 + $0x88] sm:$0xf]
        %v1378 = vld [vmem:[%s4 + $0x8c] sm:$0xf]
        %v1415 = vunpack.c.l.b16 %v1343
        %v1416 = vunpack.c.l.b16 %v1344
        %v1417 = vunpack.c.l.b16 %v1345
        %v1418 = vunpack.c.l.b16 %v1346
        %v1419 = vunpack.c.l.b16 %v1347
        %v1420 = vunpack.c.l.b16 %v1348
        %v1421 = vunpack.c.l.b16 %v1349
        %v1422 = vunpack.c.l.b16 %v1350
        %v1423 = vunpack.c.l.b16 %v1351
        %v1424 = vunpack.c.l.b16 %v1352
        %v1425 = vunpack.c.l.b16 %v1353
        %v1426 = vunpack.c.l.b16 %v1354
        %v1427 = vunpack.c.l.b16 %v1355
        %v1428 = vunpack.c.l.b16 %v1356
        %v1429 = vunpack.c.l.b16 %v1357
        %v1430 = vunpack.c.l.b16 %v1358
        %v1431 = vunpack.c.l.b16 %v1359
        %v1432 = vunpack.c.l.b16 %v1360
        %v1433 = vunpack.c.l.b16 %v1361
        %v1434 = vunpack.c.l.b16 %v1362
        %v1435 = vunpack.c.l.b16 %v1363
        %v1436 = vunpack.c.l.b16 %v1364
        %v1437 = vunpack.c.l.b16 %v1365
        %v1438 = vunpack.c.l.b16 %v1366
        %v1439 = vunpack.c.l.b16 %v1367
        %v1440 = vunpack.c.l.b16 %v1368
        %v1441 = vunpack.c.l.b16 %v1369
        %v1442 = vunpack.c.l.b16 %v1370
        %v1443 = vunpack.c.l.b16 %v1371
        %v1444 = vunpack.c.l.b16 %v1372
        %v1445 = vunpack.c.l.b16 %v1373
        %v1446 = vunpack.c.l.b16 %v1374
        %v1447 = vunpack.c.l.b16 %v1375
        %v1448 = vunpack.c.l.b16 %v1376
        %v1449 = vunpack.c.l.b16 %v1377
        %v1450 = vunpack.c.l.b16 %v1378
        %v1451 = vpack.c.b16 %v1416, %v1415
        %v1452 = vpack.c.b16 %v1418, %v1417
        %v1453 = vpack.c.b16 %v1420, %v1419
        %v1454 = vpack.c.b16 %v1422, %v1421
        %v1455 = vpack.c.b16 %v1424, %v1423
        %v1456 = vpack.c.b16 %v1426, %v1425
        %v1457 = vpack.c.b16 %v1428, %v1427
        %v1458 = vpack.c.b16 %v1430, %v1429
        %v1459 = vpack.c.b16 %v1432, %v1431
        %v1460 = vpack.c.b16 %v1434, %v1433
        %v1461 = vpack.c.b16 %v1436, %v1435
        %v1462 = vpack.c.b16 %v1438, %v1437
        %v1463 = vpack.c.b16 %v1440, %v1439
        %v1464 = vpack.c.b16 %v1442, %v1441
        %v1465 = vpack.c.b16 %v1444, %v1443
        %v1466 = vpack.c.b16 %v1446, %v1445
        %v1467 = vpack.c.b16 %v1448, %v1447
        %v1468 = vpack.c.b16 %v1450, %v1449
        %v1488 = vsel %vm971, %v1333, 0
        %v1491 = vsel %vm971, %v1336, 0
        %v1494 = vsel %vm971, %v1339, 0
        %v1497 = vsel %vm971, %v1342, 0
        %1499 = vmatprep.subr.bf16.mxu0 0
        %1500 = vmatpush1.bf16.msra.mxu0 %v1451
        %1501 = vmatprep.subr.bf16.mxu0 0
        %1502 = vmatpush1.bf16.msra.mxu0 %v1452
        %1503 = vmatprep.subr.bf16.mxu0 0
        %1504 = vmatpush1.bf16.msra.mxu0 %v1453
        %1505 = vmatprep.subr.bf16.mxu0 0
        %1506 = vmatpush1.bf16.msra.mxu0 %v1454
        %1507 = vmatprep.subr.bf16.mxu0 0
        %1508 = vmatpush1.bf16.msra.mxu0 %v1455
        %1509 = vmatprep.subr.bf16.mxu0 0
        %1510 = vmatpush1.bf16.msra.mxu0 %v1456
        %1511 = vmatprep.subr.bf16.mxu0 0
        %1512 = vmatpush1.bf16.msra.mxu0 %v1457
        %1513 = vmatprep.subr.bf16.mxu0 0
        %1514 = vmatpush1.bf16.msra.mxu0 %v1458
        %1515 = vmatprep.subr.bf16.mxu0 0
        %1516 = vmatpush1.bf16.msra.mxu0 %v1459
        %1517 = vmatprep.subr.bf16.mxu0 0
        %1518 = vmatpush1.bf16.msra.mxu0 %v1460
        %1519 = vmatprep.subr.bf16.mxu0 0
        %1520 = vmatpush1.bf16.msra.mxu0 %v1461
        %1521 = vmatprep.subr.bf16.mxu0 0
        %1522 = vmatpush1.bf16.msra.mxu0 %v1462
        %1523 = vmatprep.subr.bf16.mxu0 0
        %1524 = vmatpush1.bf16.msra.mxu0 %v1463
        %1525 = vmatprep.subr.bf16.mxu0 0
        %1526 = vmatpush1.bf16.msra.mxu0 %v1464
        %1527 = vmatprep.subr.bf16.mxu0 0
        %1528 = vmatpush1.bf16.msra.mxu0 %v1465
        %1529 = vmatprep.subr.bf16.mxu0 0
        %1530 = vmatpush1.bf16.msra.mxu0 %v1466
        %1531 = vmatprep.mubr.bf16.mxu0 %v1332
        %1532 = vmatmul.mubr.bf16.gmra.mrb[0].mxu0 %v1331
        %v1533 = vpop.f32.mrb[0].mxu0
        %v1534 = vadd.f32 0.0, %v1533
        %v1535 = vpop.f32.mrb[0].mxu0
        %v1536 = vpop.f32.mrb[0].mxu0
        %v1537 = vadd.f32 0.0, %v1536
        %v1538 = vpop.f32.mrb[0].mxu0
        %1539 = vmatprep.mubr.bf16.mxu0 %v1335
        %1540 = vmatmul.mubr.bf16.gmra.mrb[0].mxu0 %v1334
        %v1541 = vpop.f32.mrb[0].mxu0
        %v1542 = vadd.f32 0.0, %v1541
        %v1543 = vpop.f32.mrb[0].mxu0
        %v1544 = vpop.f32.mrb[0].mxu0
        %v1545 = vadd.f32 0.0, %v1544
        %v1546 = vpop.f32.mrb[0].mxu0
        %1547 = vmatprep.mubr.bf16.mxu0 %v1338
        %1548 = vmatmul.mubr.bf16.gmra.mrb[0].mxu0 %v1337
        %v1549 = vpop.f32.mrb[0].mxu0
        %v1550 = vadd.f32 0.0, %v1549
        %v1551 = vpop.f32.mrb[0].mxu0
        %v1552 = vpop.f32.mrb[0].mxu0
        %v1553 = vadd.f32 0.0, %v1552
        %v1554 = vpop.f32.mrb[0].mxu0
        %1555 = vmatprep.mubr.bf16.mxu0 %v1341
        %1556 = vmatmul.mubr.bf16.gmra.mrb[0].mxu0 %v1340
        %v1557 = vpop.f32.mrb[0].mxu0
        %v1558 = vadd.f32 0.0, %v1557
        %v1559 = vpop.f32.mrb[0].mxu0
        %v1560 = vpop.f32.mrb[0].mxu0
        %v1561 = vadd.f32 0.0, %v1560
        %v1562 = vpop.f32.mrb[0].mxu0
        %1563 = vdwg.mxu0
        %1564 = vmatprep.subr.bf16.mxu0 0
        %1565 = vmatpush1.bf16.msra.mxu0 %v1467
        %1566 = vmatprep.subr.bf16.mxu0 0
        %1567 = vmatpush1.bf16.msra.mxu0 %v1468
        %1568 = vmatprep.subr.bf16.mxu0 0
        %1569 = vmatpush1.bf16.msra.mxu0 0
        %1570 = vmatprep.subr.bf16.mxu0 0
        %1571 = vmatpush1.bf16.msra.mxu0 0
        %1572 = vmatprep.subr.bf16.mxu0 0
        %1573 = vmatpush1.bf16.msra.mxu0 0
        %1574 = vmatprep.subr.bf16.mxu0 0
        %1575 = vmatpush1.bf16.msra.mxu0 0
        %1576 = vmatprep.subr.bf16.mxu0 0
        %1577 = vmatpush1.bf16.msra.mxu0 0
        %1578 = vmatprep.subr.bf16.mxu0 0
        %1579 = vmatpush1.bf16.msra.mxu0 0
        %1580 = vmatprep.subr.bf16.mxu0 0
        %1581 = vmatpush1.bf16.msra.mxu0 0
        %1582 = vmatprep.subr.bf16.mxu0 0
        %1583 = vmatpush1.bf16.msra.mxu0 0
        %1584 = vmatprep.subr.bf16.mxu0 0
        %1585 = vmatpush1.bf16.msra.mxu0 0
        %1586 = vmatprep.subr.bf16.mxu0 0
        %1587 = vmatpush1.bf16.msra.mxu0 0
        %1588 = vmatprep.subr.bf16.mxu0 0
        %1589 = vmatpush1.bf16.msra.mxu0 0
        %1590 = vmatprep.subr.bf16.mxu0 0
        %1591 = vmatpush1.bf16.msra.mxu0 0
        %1592 = vmatprep.subr.bf16.mxu0 0
        %1593 = vmatpush1.bf16.msra.mxu0 0
        %1594 = vmatprep.subr.bf16.mxu0 0
        %1595 = vmatpush1.bf16.msra.mxu0 0
        %1596 = vmatprep.mubr.bf16.mxu0 0
        %1597 = vmatmul.mubr.bf16.gmra.mrb[0].mxu0 %v1488
        %v1598 = vpop.f32.mrb[0].mxu0
        %v1599 = vadd.f32 %v1534, %v1598
        %v1600 = vpop.f32.mrb[0].mxu0
        %v1601 = vpop.f32.mrb[0].mxu0
        %v1602 = vadd.f32 %v1537, %v1601
        %v1603 = vpop.f32.mrb[0].mxu0
        %1604 = vmatprep.mubr.bf16.mxu0 0
        %1605 = vmatmul.mubr.bf16.gmra.mrb[0].mxu0 %v1491
        %v1606 = vpop.f32.mrb[0].mxu0
        %v1607 = vadd.f32 %v1542, %v1606
        %v1608 = vpop.f32.mrb[0].mxu0
        %v1609 = vpop.f32.mrb[0].mxu0
        %v1610 = vadd.f32 %v1545, %v1609
        %v1611 = vpop.f32.mrb[0].mxu0
        %1612 = vmatprep.mubr.bf16.mxu0 0
        %1613 = vmatmul.mubr.bf16.gmra.mrb[0].mxu0 %v1494
        %v1614 = vpop.f32.mrb[0].mxu0
        %v1615 = vadd.f32 %v1550, %v1614
        %v1616 = vpop.f32.mrb[0].mxu0
        %v1617 = vpop.f32.mrb[0].mxu0
        %v1618 = vadd.f32 %v1553, %v1617
        %v1619 = vpop.f32.mrb[0].mxu0
        %1620 = vmatprep.mubr.bf16.mxu0 0
        %1621 = vmatmul.mubr.bf16.gmra.mrb[0].mxu0 %v1497
        %v1622 = vpop.f32.mrb[0].mxu0
        %v1623 = vadd.f32 %v1558, %v1622
        %v1624 = vpop.f32.mrb[0].mxu0
        %v1625 = vpop.f32.mrb[0].mxu0
        %v1626 = vadd.f32 %v1561, %v1625
        %v1627 = vpop.f32.mrb[0].mxu0
        %1628 = vdwg.mxu0
        %v1629 = vld [vmem:[%s5] sm:$0x1]
        %v1631 = vlaneseq
        %v1632 = vshrl.u32 %v1631, 7
        %v1633 = vsub.s32 0, %v1632
        %v1634 = vrot.slane %v1629, %v1633
        %v1636 = vmul.f32 %v1599, %v1634
        %v1637 = vmul.f32 %v1602, %v1634
        %v1638 = vmul.f32 %v1607, %v1634
        %v1639 = vmul.f32 %v1610, %v1634
        %v1640 = vmul.f32 %v1615, %v1634
        %v1641 = vmul.f32 %v1618, %v1634
        %v1642 = vmul.f32 %v1623, %v1634
        %v1643 = vmul.f32 %v1626, %v1634
        %v1644 = vld [vmem:[%s6] sm:$0x1]
        %v1646 = vlaneseq
        %v1647 = vshrl.u32 %v1646, 7
        %v1648 = vsub.s32 0, %v1647
        %v1649 = vrot.slane %v1644, %v1648
        %v1651 = vadd.f32 %v1636, %v1649
        %v1652 = vadd.f32 %v1637, %v1649
        %v1653 = vadd.f32 %v1638, %v1649
        %v1654 = vadd.f32 %v1639, %v1649
        %v1655 = vadd.f32 %v1640, %v1649
        %v1656 = vadd.f32 %v1641, %v1649
        %v1657 = vadd.f32 %v1642, %v1649
        %v1658 = vadd.f32 %v1643, %v1649
        %v1659 = vmax.f32 %v1651, 0.0
        %v1660 = vmax.f32 %v1652, 0.0
        %v1661 = vmax.f32 %v1653, 0.0
        %v1662 = vmax.f32 %v1654, 0.0
        %v1663 = vmax.f32 %v1655, 0.0
        %v1664 = vmax.f32 %v1656, 0.0
        %v1665 = vmax.f32 %v1657, 0.0
        %v1666 = vmax.f32 %v1658, 0.0
        %v1667 = vpack.c.bf16 %v1659, %v1659
        %v1668 = vpack.c.bf16 %v1660, %v1660
        %v1669 = vpack.c.bf16 %v1661, %v1661
        %v1670 = vpack.c.bf16 %v1662, %v1662
        %v1671 = vpack.c.bf16 %v1663, %v1663
        %v1672 = vpack.c.bf16 %v1664, %v1664
        %v1673 = vpack.c.bf16 %v1665, %v1665
        %v1674 = vpack.c.bf16 %v1666, %v1666
        %v1676 = vshrl.u32 %v1667, 16
        %v1678 = vrot.slane %v1676, 7
        %v1679 = vshll.u32 %v1667, 16
        %v1681 = vor.u32 %v1678, %v1679
        %v1683 = vshrl.u32 %v1668, 16
        %v1685 = vrot.slane %v1683, 7
        %v1686 = vshll.u32 %v1668, 16
        %v1688 = vor.u32 %v1685, %v1686
        %v1690 = vshrl.u32 %v1669, 16
        %v1692 = vrot.slane %v1690, 7
        %v1693 = vshll.u32 %v1669, 16
        %v1695 = vor.u32 %v1692, %v1693
        %v1697 = vshrl.u32 %v1670, 16
        %v1699 = vrot.slane %v1697, 7
        %v1700 = vshll.u32 %v1670, 16
        %v1702 = vor.u32 %v1699, %v1700
        %v1704 = vshrl.u32 %v1671, 16
        %v1706 = vrot.slane %v1704, 7
        %v1707 = vshll.u32 %v1671, 16
        %v1709 = vor.u32 %v1706, %v1707
        %v1711 = vshrl.u32 %v1672, 16
        %v1713 = vrot.slane %v1711, 7
        %v1714 = vshll.u32 %v1672, 16
        %v1716 = vor.u32 %v1713, %v1714
        %v1718 = vshrl.u32 %v1673, 16
        %v1720 = vrot.slane %v1718, 7
        %v1721 = vshll.u32 %v1673, 16
        %v1723 = vor.u32 %v1720, %v1721
        %v1725 = vshrl.u32 %v1674, 16
        %v1727 = vrot.slane %v1725, 7
        %v1728 = vshll.u32 %v1674, 16
        %v1730 = vor.u32 %v1727, %v1728
        %v1739 = vsel %vm827, 0, %v1681
        %v1740 = vsel %vm827, 0, %v1688
        %v1741 = vsel %vm827, 0, %v1695
        %v1742 = vsel %vm827, 0, %v1702
        %v1743 = vsel %vm827, 0, %v1709
        %v1744 = vsel %vm827, 0, %v1716
        %v1745 = vsel %vm827, 0, %v1723
        %v1746 = vsel %vm827, 0, %v1730
        %v1747 = vsel %vm838, %v1739, 0
        %v1748 = vsel %vm838, %v1740, 0
        %v1749 = vsel %vm838, %v1741, 0
        %v1750 = vsel %vm838, %v1742, 0
        %v1751 = vsel %vm838, %v1743, 0
        %v1752 = vsel %vm838, %v1744, 0
        %v1753 = vsel %vm838, %v1745, 0
        %v1754 = vsel %vm838, %v1746, 0
        %v1763 = vunpack.c.l.b16 %v1747
        %v1764 = vunpack.c.h.b16 %v1747
        %v1765 = vunpack.c.l.b16 %v1748
        %v1766 = vunpack.c.h.b16 %v1748
        %v1767 = vunpack.c.l.b16 %v1749
        %v1768 = vunpack.c.h.b16 %v1749
        %v1769 = vunpack.c.l.b16 %v1750
        %v1770 = vunpack.c.h.b16 %v1750
        %v1771 = vunpack.c.l.b16 %v1751
        %v1772 = vunpack.c.h.b16 %v1751
        %v1773 = vunpack.c.l.b16 %v1752
        %v1774 = vunpack.c.h.b16 %v1752
        %v1775 = vunpack.c.l.b16 %v1753
        %v1776 = vunpack.c.h.b16 %v1753
        %v1777 = vunpack.c.l.b16 %v1754
        %v1778 = vunpack.c.h.b16 %v1754
        %v1779 = vpack.c.b16 %v1763, %v1763
        %v1780 = vpack.c.b16 %v1764, %v1764
        %v1781 = vpack.c.b16 %v1765, %v1765
        %v1782 = vpack.c.b16 %v1766, %v1766
        %v1783 = vpack.c.b16 %v1767, %v1767
        %v1784 = vpack.c.b16 %v1768, %v1768
        %v1785 = vpack.c.b16 %v1769, %v1769
        %v1786 = vpack.c.b16 %v1770, %v1770
        %v1787 = vpack.c.b16 %v1771, %v1771
        %v1788 = vpack.c.b16 %v1772, %v1772
        %v1789 = vpack.c.b16 %v1773, %v1773
        %v1790 = vpack.c.b16 %v1774, %v1774
        %v1791 = vpack.c.b16 %v1775, %v1775
        %v1792 = vpack.c.b16 %v1776, %v1776
        %v1793 = vpack.c.b16 %v1777, %v1777
        %v1794 = vpack.c.b16 %v1778, %v1778
        %s1811 = scalar_lea.vmem [#allocation3], 8
        %1812 = vst.msk [vmem:[%s1811] sm:$0xf] %vm904, %v1779
        %1813 = vst.msk [vmem:[%s1811 + $0x4] sm:$0x1] %vm906, %v1780
        %1814 = vst.msk [vmem:[%s1811 + $0x8] sm:$0xf] %vm904, %v1781
        %1815 = vst.msk [vmem:[%s1811 + $0xc] sm:$0x1] %vm906, %v1782
        %1816 = vst.msk [vmem:[%s1811 + $0x10] sm:$0xf] %vm904, %v1783
        %1817 = vst.msk [vmem:[%s1811 + $0x14] sm:$0x1] %vm906, %v1784
        %1818 = vst.msk [vmem:[%s1811 + $0x18] sm:$0xf] %vm904, %v1785
        %1819 = vst.msk [vmem:[%s1811 + $0x1c] sm:$0x1] %vm906, %v1786
        %1820 = vst.msk [vmem:[%s1811 + $0x20] sm:$0xf] %vm904, %v1787
        %1821 = vst.msk [vmem:[%s1811 + $0x24] sm:$0x1] %vm906, %v1788
        %1822 = vst.msk [vmem:[%s1811 + $0x28] sm:$0xf] %vm904, %v1789
        %1823 = vst.msk [vmem:[%s1811 + $0x2c] sm:$0x1] %vm906, %v1790
        %1824 = vst.msk [vmem:[%s1811 + $0x30] sm:$0xf] %vm904, %v1791
        %1825 = vst.msk [vmem:[%s1811 + $0x34] sm:$0x1] %vm906, %v1792
        %1826 = vst.msk [vmem:[%s1811 + $0x38] sm:$0xf] %vm904, %v1793
        %1827 = vst.msk [vmem:[%s1811 + $0x3c] sm:$0x1] %vm906, %v1794
        %1828 = vst.msk [vmem:[#allocation3] sm:$0xf] %vm904, 0
        %1829 = vst.msk [vmem:[#allocation3 + $0x4] sm:$0x1] %vm906, 0
        %s1830 = scalar_lea.vmem [#allocation3], 72
        %1831 = vst.msk [vmem:[%s1830] sm:$0xf] %vm904, 0
        %1832 = vst.msk [vmem:[%s1830 + $0x4] sm:$0x1] %vm906, 0
        %v1833 = vld [vmem:[#allocation3] sm:$0xf]
        %v1834 = vld [vmem:[#allocation3 + $0x4] sm:$0x1]
        %v1835 = vld [vmem:[#allocation3 + $0x8] sm:$0xf]
        %v1836 = vld [vmem:[#allocation3 + $0xc] sm:$0x1]
        %v1837 = vld [vmem:[#allocation3 + $0x10] sm:$0xf]
        %v1838 = vld [vmem:[#allocation3 + $0x14] sm:$0x1]
        %v1839 = vld [vmem:[#allocation3 + $0x18] sm:$0xf]
        %v1840 = vld [vmem:[#allocation3 + $0x1c] sm:$0x1]
        %v1841 = vld [vmem:[#allocation3 + $0x20] sm:$0xf]
        %v1842 = vld [vmem:[#allocation3 + $0x24] sm:$0x1]
        %v1843 = vld [vmem:[#allocation3 + $0x28] sm:$0xf]
        %v1844 = vld [vmem:[#allocation3 + $0x2c] sm:$0x1]
        %v1845 = vld [vmem:[#allocation3 + $0x30] sm:$0xf]
        %v1846 = vld [vmem:[#allocation3 + $0x34] sm:$0x1]
        %v1847 = vld [vmem:[#allocation3 + $0x38] sm:$0xf]
        %v1848 = vld [vmem:[#allocation3 + $0x3c] sm:$0x1]
        %v1849 = vld [vmem:[#allocation3 + $0x40] sm:$0xf]
        %v1850 = vld [vmem:[#allocation3 + $0x44] sm:$0x1]
        %v1851 = vld [vmem:[#allocation3 + $0x48] sm:$0xf]
        %v1852 = vld [vmem:[#allocation3 + $0x4c] sm:$0x1]
        %v1861 = vunpack.c.l.b16 %v1833
        %v1862 = vunpack.c.l.b16 %v1835
        %v1863 = vunpack.c.l.b16 %v1837
        %v1864 = vunpack.c.l.b16 %v1839
        %v1865 = vunpack.c.l.b16 %v1841
        %v1866 = vunpack.c.l.b16 %v1843
        %v1867 = vunpack.c.l.b16 %v1845
        %v1868 = vunpack.c.l.b16 %v1847
        %v1869 = vpack.c.b16 %v1862, %v1861
        %v1870 = vpack.c.b16 %v1864, %v1863
        %v1871 = vpack.c.b16 %v1866, %v1865
        %v1872 = vpack.c.b16 %v1868, %v1867
        %1877 = vst.msk [vmem:[#allocation5] sm:$0xff] %vm971, %v1869
        %1878 = vst.msk [vmem:[#allocation5 + $0x18] sm:$0xff] %vm971, %v1870
        %1879 = vst.msk [vmem:[#allocation5 + $0x30] sm:$0xff] %vm971, %v1871
        %1880 = vst.msk [vmem:[#allocation5 + $0x48] sm:$0xff] %vm971, %v1872
        %v1882 = vshrl.u32 %v1833, 16
        %v1884 = vrot.slane %v1882, 4
        %v1885 = vshll.u32 %v1833, 16
        %v1887 = vrot.slane %v1885, 5
        %v1888 = vor.u32 %v1884, %v1887
        %v1889 = vrot.slane %v1888, 4
        %v1891 = vshll.u32 %v1834, 16
        %v1893 = vrot.slane %v1891, 5
        %v1894 = vsel %vm408, %v1889, %v1893
        %v1896 = vshrl.u32 %v1835, 16
        %v1898 = vrot.slane %v1896, 4
        %v1899 = vshll.u32 %v1835, 16
        %v1901 = vrot.slane %v1899, 5
        %v1902 = vor.u32 %v1898, %v1901
        %v1903 = vrot.slane %v1902, 4
        %v1905 = vshll.u32 %v1836, 16
        %v1907 = vrot.slane %v1905, 5
        %v1908 = vsel %vm408, %v1903, %v1907
        %v1910 = vshrl.u32 %v1837, 16
        %v1912 = vrot.slane %v1910, 4
        %v1913 = vshll.u32 %v1837, 16
        %v1915 = vrot.slane %v1913, 5
        %v1916 = vor.u32 %v1912, %v1915
        %v1917 = vrot.slane %v1916, 4
        %v1919 = vshll.u32 %v1838, 16
        %v1921 = vrot.slane %v1919, 5
        %v1922 = vsel %vm408, %v1917, %v1921
        %v1924 = vshrl.u32 %v1839, 16
        %v1926 = vrot.slane %v1924, 4
        %v1927 = vshll.u32 %v1839, 16
        %v1929 = vrot.slane %v1927, 5
        %v1930 = vor.u32 %v1926, %v1929
        %v1931 = vrot.slane %v1930, 4
        %v1933 = vshll.u32 %v1840, 16
        %v1935 = vrot.slane %v1933, 5
        %v1936 = vsel %vm408, %v1931, %v1935
        %v1938 = vshrl.u32 %v1841, 16
        %v1940 = vrot.slane %v1938, 4
        %v1941 = vshll.u32 %v1841, 16
        %v1943 = vrot.slane %v1941, 5
        %v1944 = vor.u32 %v1940, %v1943
        %v1945 = vrot.slane %v1944, 4
        %v1947 = vshll.u32 %v1842, 16
        %v1949 = vrot.slane %v1947, 5
        %v1950 = vsel %vm408, %v1945, %v1949
        %v1952 = vshrl.u32 %v1843, 16
        %v1954 = vrot.slane %v1952, 4
        %v1955 = vshll.u32 %v1843, 16
        %v1957 = vrot.slane %v1955, 5
        %v1958 = vor.u32 %v1954, %v1957
        %v1959 = vrot.slane %v1958, 4
        %v1961 = vshll.u32 %v1844, 16
        %v1963 = vrot.slane %v1961, 5
        %v1964 = vsel %vm408, %v1959, %v1963
        %v1966 = vshrl.u32 %v1845, 16
        %v1968 = vrot.slane %v1966, 4
        %v1969 = vshll.u32 %v1845, 16
        %v1971 = vrot.slane %v1969, 5
        %v1972 = vor.u32 %v1968, %v1971
        %v1973 = vrot.slane %v1972, 4
        %v1975 = vshll.u32 %v1846, 16
        %v1977 = vrot.slane %v1975, 5
        %v1978 = vsel %vm408, %v1973, %v1977
        %v1980 = vshrl.u32 %v1847, 16
        %v1982 = vrot.slane %v1980, 4
        %v1983 = vshll.u32 %v1847, 16
        %v1985 = vrot.slane %v1983, 5
        %v1986 = vor.u32 %v1982, %v1985
        %v1987 = vrot.slane %v1986, 4
        %v1989 = vshll.u32 %v1848, 16
        %v1991 = vrot.slane %v1989, 5
        %v1992 = vsel %vm408, %v1987, %v1991
        %v1993 = vunpack.c.l.b16 %v1894
        %v1994 = vunpack.c.l.b16 %v1908
        %v1995 = vunpack.c.l.b16 %v1922
        %v1996 = vunpack.c.l.b16 %v1936
        %v1997 = vunpack.c.l.b16 %v1950
        %v1998 = vunpack.c.l.b16 %v1964
        %v1999 = vunpack.c.l.b16 %v1978
        %v2000 = vunpack.c.l.b16 %v1992
        %v2001 = vpack.c.b16 %v1994, %v1993
        %v2002 = vpack.c.b16 %v1996, %v1995
        %v2003 = vpack.c.b16 %v1998, %v1997
        %v2004 = vpack.c.b16 %v2000, %v1999
        %2005 = vrot.lane.b32.xlu0 %v2001, 32
        %v2006 = vpop.permute.xlu0 %2005
        %2007 = vrot.lane.b32.xlu0 %v2002, 32
        %v2008 = vpop.permute.xlu0 %2007
        %2009 = vrot.lane.b32.xlu0 %v2003, 32
        %v2010 = vpop.permute.xlu0 %2009
        %2011 = vrot.lane.b32.xlu0 %v2004, 32
        %v2012 = vpop.permute.xlu0 %2011
        %2017 = vst.msk [vmem:[#allocation5] sm:$0xff] %vm1112, %v2006
        %2018 = vst.msk [vmem:[#allocation5 + $0x18] sm:$0xff] %vm1112, %v2008
        %2019 = vst.msk [vmem:[#allocation5 + $0x30] sm:$0xff] %vm1112, %v2010
        %2020 = vst.msk [vmem:[#allocation5 + $0x48] sm:$0xff] %vm1112, %v2012
        %v2029 = vrot.slane %v1833, 5
        %v2030 = vrot.slane %v2029, 4
        %v2031 = vrot.slane %v1834, 5
        %v2032 = vsel %vm1127, %v2030, %v2031
        %v2033 = vrot.slane %v1835, 5
        %v2034 = vrot.slane %v2033, 4
        %v2035 = vrot.slane %v1836, 5
        %v2036 = vsel %vm1127, %v2034, %v2035
        %v2037 = vrot.slane %v1837, 5
        %v2038 = vrot.slane %v2037, 4
        %v2039 = vrot.slane %v1838, 5
        %v2040 = vsel %vm1127, %v2038, %v2039
        %v2041 = vrot.slane %v1839, 5
        %v2042 = vrot.slane %v2041, 4
        %v2043 = vrot.slane %v1840, 5
        %v2044 = vsel %vm1127, %v2042, %v2043
        %v2045 = vrot.slane %v1841, 5
        %v2046 = vrot.slane %v2045, 4
        %v2047 = vrot.slane %v1842, 5
        %v2048 = vsel %vm1127, %v2046, %v2047
        %v2049 = vrot.slane %v1843, 5
        %v2050 = vrot.slane %v2049, 4
        %v2051 = vrot.slane %v1844, 5
        %v2052 = vsel %vm1127, %v2050, %v2051
        %v2053 = vrot.slane %v1845, 5
        %v2054 = vrot.slane %v2053, 4
        %v2055 = vrot.slane %v1846, 5
        %v2056 = vsel %vm1127, %v2054, %v2055
        %v2057 = vrot.slane %v1847, 5
        %v2058 = vrot.slane %v2057, 4
        %v2059 = vrot.slane %v1848, 5
        %v2060 = vsel %vm1127, %v2058, %v2059
        %v2061 = vunpack.c.l.b16 %v2032
        %v2062 = vunpack.c.l.b16 %v2036
        %v2063 = vunpack.c.l.b16 %v2040
        %v2064 = vunpack.c.l.b16 %v2044
        %v2065 = vunpack.c.l.b16 %v2048
        %v2066 = vunpack.c.l.b16 %v2052
        %v2067 = vunpack.c.l.b16 %v2056
        %v2068 = vunpack.c.l.b16 %v2060
        %v2069 = vpack.c.b16 %v2062, %v2061
        %v2070 = vpack.c.b16 %v2064, %v2063
        %v2071 = vpack.c.b16 %v2066, %v2065
        %v2072 = vpack.c.b16 %v2068, %v2067
        %2073 = vrot.lane.b32.xlu0 %v2069, 64
        %v2074 = vpop.permute.xlu0 %2073
        %2075 = vrot.lane.b32.xlu0 %v2070, 64
        %v2076 = vpop.permute.xlu0 %2075
        %2077 = vrot.lane.b32.xlu0 %v2071, 64
        %v2078 = vpop.permute.xlu0 %2077
        %2079 = vrot.lane.b32.xlu0 %v2072, 64
        %v2080 = vpop.permute.xlu0 %2079
        %2085 = vst.msk [vmem:[#allocation5] sm:$0xff] %vm1184, %v2074
        %2086 = vst.msk [vmem:[#allocation5 + $0x18] sm:$0xff] %vm1184, %v2076
        %2087 = vst.msk [vmem:[#allocation5 + $0x30] sm:$0xff] %vm1184, %v2078
        %2088 = vst.msk [vmem:[#allocation5 + $0x48] sm:$0xff] %vm1184, %v2080
        %v2090 = vunpack.c.l.b16 %v1849
        %v2091 = vpack.c.b16 %v1863, %v1862
        %v2092 = vpack.c.b16 %v1865, %v1864
        %v2093 = vpack.c.b16 %v1867, %v1866
        %v2094 = vpack.c.b16 %v2090, %v1868
        %2095 = vrot.lane.b32.xlu0 %v2091, 96
        %v2096 = vpop.permute.xlu0 %2095
        %2097 = vrot.lane.b32.xlu0 %v2092, 96
        %v2098 = vpop.permute.xlu0 %2097
        %2099 = vrot.lane.b32.xlu0 %v2093, 96
        %v2100 = vpop.permute.xlu0 %2099
        %2101 = vrot.lane.b32.xlu0 %v2094, 96
        %v2102 = vpop.permute.xlu0 %2101
        %2107 = vst.msk [vmem:[#allocation5] sm:$0xff] %vm1207, %v2096
        %2108 = vst.msk [vmem:[#allocation5 + $0x18] sm:$0xff] %vm1207, %v2098
        %2109 = vst.msk [vmem:[#allocation5 + $0x30] sm:$0xff] %vm1207, %v2100
        %2110 = vst.msk [vmem:[#allocation5 + $0x48] sm:$0xff] %vm1207, %v2102
        %v2112 = vshrl.u32 %v1849, 16
        %v2114 = vrot.slane %v2112, 4
        %v2115 = vshll.u32 %v1849, 16
        %v2117 = vrot.slane %v2115, 5
        %v2118 = vor.u32 %v2114, %v2117
        %v2119 = vrot.slane %v2118, 4
        %v2121 = vshll.u32 %v1850, 16
        %v2123 = vrot.slane %v2121, 5
        %v2124 = vsel %vm408, %v2119, %v2123
        %v2125 = vunpack.c.l.b16 %v2124
        %v2126 = vpack.c.b16 %v1995, %v1994
        %v2127 = vpack.c.b16 %v1997, %v1996
        %v2128 = vpack.c.b16 %v1999, %v1998
        %v2129 = vpack.c.b16 %v2125, %v2000
        %2134 = vst.msk [vmem:[#allocation5 + $0x8] sm:$0xff] %vm971, %v2126
        %2135 = vst.msk [vmem:[#allocation5 + $0x20] sm:$0xff] %vm971, %v2127
        %2136 = vst.msk [vmem:[#allocation5 + $0x38] sm:$0xff] %vm971, %v2128
        %2137 = vst.msk [vmem:[#allocation5 + $0x50] sm:$0xff] %vm971, %v2129
        %v2139 = vrot.slane %v1849, 5
        %v2140 = vrot.slane %v2139, 4
        %v2141 = vrot.slane %v1850, 5
        %v2142 = vsel %vm1127, %v2140, %v2141
        %v2143 = vunpack.c.l.b16 %v2142
        %v2144 = vpack.c.b16 %v2063, %v2062
        %v2145 = vpack.c.b16 %v2065, %v2064
        %v2146 = vpack.c.b16 %v2067, %v2066
        %v2147 = vpack.c.b16 %v2143, %v2068
        %2148 = vrot.lane.b32.xlu0 %v2144, 32
        %v2149 = vpop.permute.xlu0 %2148
        %2150 = vrot.lane.b32.xlu0 %v2145, 32
        %v2151 = vpop.permute.xlu0 %2150
        %2152 = vrot.lane.b32.xlu0 %v2146, 32
        %v2153 = vpop.permute.xlu0 %2152
        %2154 = vrot.lane.b32.xlu0 %v2147, 32
        %v2155 = vpop.permute.xlu0 %2154
        %2160 = vst.msk [vmem:[#allocation5 + $0x8] sm:$0xff] %vm1112, %v2149
        %2161 = vst.msk [vmem:[#allocation5 + $0x20] sm:$0xff] %vm1112, %v2151
        %2162 = vst.msk [vmem:[#allocation5 + $0x38] sm:$0xff] %vm1112, %v2153
        %2163 = vst.msk [vmem:[#allocation5 + $0x50] sm:$0xff] %vm1112, %v2155
        %v2165 = vunpack.c.l.b16 %v1851
        %v2166 = vpack.c.b16 %v2165, %v2090
        %2167 = vrot.lane.b32.xlu0 %v1870, 64
        %v2168 = vpop.permute.xlu0 %2167
        %2169 = vrot.lane.b32.xlu0 %v1871, 64
        %v2170 = vpop.permute.xlu0 %2169
        %2171 = vrot.lane.b32.xlu0 %v1872, 64
        %v2172 = vpop.permute.xlu0 %2171
        %2173 = vrot.lane.b32.xlu0 %v2166, 64
        %v2174 = vpop.permute.xlu0 %2173
        %2179 = vst.msk [vmem:[#allocation5 + $0x8] sm:$0xff] %vm1184, %v2168
        %2180 = vst.msk [vmem:[#allocation5 + $0x20] sm:$0xff] %vm1184, %v2170
        %2181 = vst.msk [vmem:[#allocation5 + $0x38] sm:$0xff] %vm1184, %v2172
        %2182 = vst.msk [vmem:[#allocation5 + $0x50] sm:$0xff] %vm1184, %v2174
        %v2184 = vshrl.u32 %v1851, 16
        %v2186 = vrot.slane %v2184, 4
        %v2187 = vshll.u32 %v1851, 16
        %v2189 = vrot.slane %v2187, 5
        %v2190 = vor.u32 %v2186, %v2189
        %v2191 = vrot.slane %v2190, 4
        %v2193 = vshll.u32 %v1852, 16
        %v2195 = vrot.slane %v2193, 5
        %v2196 = vsel %vm408, %v2191, %v2195
        %v2197 = vunpack.c.l.b16 %v2196
        %v2198 = vpack.c.b16 %v2197, %v2125
        %2199 = vrot.lane.b32.xlu0 %v2002, 96
        %v2200 = vpop.permute.xlu0 %2199
        %2201 = vrot.lane.b32.xlu0 %v2003, 96
        %v2202 = vpop.permute.xlu0 %2201
        %2203 = vrot.lane.b32.xlu0 %v2004, 96
        %v2204 = vpop.permute.xlu0 %2203
        %2205 = vrot.lane.b32.xlu0 %v2198, 96
        %v2206 = vpop.permute.xlu0 %2205
        %2211 = vst.msk [vmem:[#allocation5 + $0x8] sm:$0xff] %vm1207, %v2200
        %2212 = vst.msk [vmem:[#allocation5 + $0x20] sm:$0xff] %vm1207, %v2202
        %2213 = vst.msk [vmem:[#allocation5 + $0x38] sm:$0xff] %vm1207, %v2204
        %2214 = vst.msk [vmem:[#allocation5 + $0x50] sm:$0xff] %vm1207, %v2206
        %v2216 = vrot.slane %v1851, 5
        %v2217 = vrot.slane %v2216, 4
        %v2218 = vrot.slane %v1852, 5
        %v2219 = vsel %vm1127, %v2217, %v2218
        %v2220 = vunpack.c.l.b16 %v2219
        %v2221 = vpack.c.b16 %v2220, %v2143
        %2226 = vst.msk [vmem:[#allocation5 + $0x10] sm:$0xff] %vm971, %v2070
        %2227 = vst.msk [vmem:[#allocation5 + $0x28] sm:$0xff] %vm971, %v2071
        %2228 = vst.msk [vmem:[#allocation5 + $0x40] sm:$0xff] %vm971, %v2072
        %2229 = vst.msk [vmem:[#allocation5 + $0x58] sm:$0xff] %vm971, %v2221
        %v2230 = vld [vmem:[#allocation5] sm:$0xff]
        %v2231 = vld [vmem:[#allocation5 + $0x8] sm:$0xff]
        %v2232 = vld [vmem:[#allocation5 + $0x10] sm:$0xff]
        %v2233 = vld [vmem:[#allocation5 + $0x18] sm:$0xff]
        %v2234 = vld [vmem:[#allocation5 + $0x20] sm:$0xff]
        %v2235 = vld [vmem:[#allocation5 + $0x28] sm:$0xff]
        %v2236 = vld [vmem:[#allocation5 + $0x30] sm:$0xff]
        %v2237 = vld [vmem:[#allocation5 + $0x38] sm:$0xff]
        %v2238 = vld [vmem:[#allocation5 + $0x40] sm:$0xff]
        %v2239 = vld [vmem:[#allocation5 + $0x48] sm:$0xff]
        %v2240 = vld [vmem:[#allocation5 + $0x50] sm:$0xff]
        %v2241 = vld [vmem:[#allocation5 + $0x58] sm:$0xff]
        %v2242 = vld [vmem:[%s7] sm:$0xf]
        %v2243 = vld [vmem:[%s7 + $0x4] sm:$0xf]
        %v2244 = vld [vmem:[%s7 + $0x8] sm:$0xf]
        %v2245 = vld [vmem:[%s7 + $0xc] sm:$0xf]
        %v2246 = vld [vmem:[%s7 + $0x10] sm:$0xf]
        %v2247 = vld [vmem:[%s7 + $0x14] sm:$0xf]
        %v2248 = vld [vmem:[%s7 + $0x18] sm:$0xf]
        %v2249 = vld [vmem:[%s7 + $0x1c] sm:$0xf]
        %v2250 = vld [vmem:[%s7 + $0x20] sm:$0xf]
        %v2251 = vld [vmem:[%s7 + $0x24] sm:$0xf]
        %v2252 = vld [vmem:[%s7 + $0x28] sm:$0xf]
        %v2253 = vld [vmem:[%s7 + $0x2c] sm:$0xf]
        %v2254 = vld [vmem:[%s7 + $0x30] sm:$0xf]
        %v2255 = vld [vmem:[%s7 + $0x34] sm:$0xf]
        %v2256 = vld [vmem:[%s7 + $0x38] sm:$0xf]
        %v2257 = vld [vmem:[%s7 + $0x3c] sm:$0xf]
        %v2258 = vld [vmem:[%s7 + $0x40] sm:$0xf]
        %v2259 = vld [vmem:[%s7 + $0x44] sm:$0xf]
        %v2260 = vld [vmem:[%s7 + $0x48] sm:$0xf]
        %v2261 = vld [vmem:[%s7 + $0x4c] sm:$0xf]
        %v2262 = vld [vmem:[%s7 + $0x50] sm:$0xf]
        %v2263 = vld [vmem:[%s7 + $0x54] sm:$0xf]
        %v2264 = vld [vmem:[%s7 + $0x58] sm:$0xf]
        %v2265 = vld [vmem:[%s7 + $0x5c] sm:$0xf]
        %v2266 = vld [vmem:[%s7 + $0x60] sm:$0xf]
        %v2267 = vld [vmem:[%s7 + $0x64] sm:$0xf]
        %v2268 = vld [vmem:[%s7 + $0x68] sm:$0xf]
        %v2269 = vld [vmem:[%s7 + $0x6c] sm:$0xf]
        %v2270 = vld [vmem:[%s7 + $0x70] sm:$0xf]
        %v2271 = vld [vmem:[%s7 + $0x74] sm:$0xf]
        %v2272 = vld [vmem:[%s7 + $0x78] sm:$0xf]
        %v2273 = vld [vmem:[%s7 + $0x7c] sm:$0xf]
        %v2274 = vld [vmem:[%s7 + $0x80] sm:$0xf]
        %v2275 = vld [vmem:[%s7 + $0x84] sm:$0xf]
        %v2276 = vld [vmem:[%s7 + $0x88] sm:$0xf]
        %v2277 = vld [vmem:[%s7 + $0x8c] sm:$0xf]
        %v2314 = vunpack.c.l.b16 %v2242
        %v2315 = vunpack.c.l.b16 %v2243
        %v2316 = vunpack.c.l.b16 %v2244
        %v2317 = vunpack.c.l.b16 %v2245
        %v2318 = vunpack.c.l.b16 %v2246
        %v2319 = vunpack.c.l.b16 %v2247
        %v2320 = vunpack.c.l.b16 %v2248
        %v2321 = vunpack.c.l.b16 %v2249
        %v2322 = vunpack.c.l.b16 %v2250
        %v2323 = vunpack.c.l.b16 %v2251
        %v2324 = vunpack.c.l.b16 %v2252
        %v2325 = vunpack.c.l.b16 %v2253
        %v2326 = vunpack.c.l.b16 %v2254
        %v2327 = vunpack.c.l.b16 %v2255
        %v2328 = vunpack.c.l.b16 %v2256
        %v2329 = vunpack.c.l.b16 %v2257
        %v2330 = vunpack.c.l.b16 %v2258
        %v2331 = vunpack.c.l.b16 %v2259
        %v2332 = vunpack.c.l.b16 %v2260
        %v2333 = vunpack.c.l.b16 %v2261
        %v2334 = vunpack.c.l.b16 %v2262
        %v2335 = vunpack.c.l.b16 %v2263
        %v2336 = vunpack.c.l.b16 %v2264
        %v2337 = vunpack.c.l.b16 %v2265
        %v2338 = vunpack.c.l.b16 %v2266
        %v2339 = vunpack.c.l.b16 %v2267
        %v2340 = vunpack.c.l.b16 %v2268
        %v2341 = vunpack.c.l.b16 %v2269
        %v2342 = vunpack.c.l.b16 %v2270
        %v2343 = vunpack.c.l.b16 %v2271
        %v2344 = vunpack.c.l.b16 %v2272
        %v2345 = vunpack.c.l.b16 %v2273
        %v2346 = vunpack.c.l.b16 %v2274
        %v2347 = vunpack.c.l.b16 %v2275
        %v2348 = vunpack.c.l.b16 %v2276
        %v2349 = vunpack.c.l.b16 %v2277
        %v2350 = vpack.c.b16 %v2315, %v2314
        %v2351 = vpack.c.b16 %v2317, %v2316
        %v2352 = vpack.c.b16 %v2319, %v2318
        %v2353 = vpack.c.b16 %v2321, %v2320
        %v2354 = vpack.c.b16 %v2323, %v2322
        %v2355 = vpack.c.b16 %v2325, %v2324
        %v2356 = vpack.c.b16 %v2327, %v2326
        %v2357 = vpack.c.b16 %v2329, %v2328
        %v2358 = vpack.c.b16 %v2331, %v2330
        %v2359 = vpack.c.b16 %v2333, %v2332
        %v2360 = vpack.c.b16 %v2335, %v2334
        %v2361 = vpack.c.b16 %v2337, %v2336
        %v2362 = vpack.c.b16 %v2339, %v2338
        %v2363 = vpack.c.b16 %v2341, %v2340
        %v2364 = vpack.c.b16 %v2343, %v2342
        %v2365 = vpack.c.b16 %v2345, %v2344
        %v2366 = vpack.c.b16 %v2347, %v2346
        %v2367 = vpack.c.b16 %v2349, %v2348
        %v2387 = vsel %vm971, %v2232, 0
        %v2390 = vsel %vm971, %v2235, 0
        %v2393 = vsel %vm971, %v2238, 0
        %v2396 = vsel %vm971, %v2241, 0
        %2398 = vmatprep.subr.bf16.mxu0 0
        %2399 = vmatpush1.bf16.msra.mxu0 %v2350
        %2400 = vmatprep.subr.bf16.mxu0 0
        %2401 = vmatpush1.bf16.msra.mxu0 %v2351
        %2402 = vmatprep.subr.bf16.mxu0 0
        %2403 = vmatpush1.bf16.msra.mxu0 %v2352
        %2404 = vmatprep.subr.bf16.mxu0 0
        %2405 = vmatpush1.bf16.msra.mxu0 %v2353
        %2406 = vmatprep.subr.bf16.mxu0 0
        %2407 = vmatpush1.bf16.msra.mxu0 %v2354
        %2408 = vmatprep.subr.bf16.mxu0 0
        %2409 = vmatpush1.bf16.msra.mxu0 %v2355
        %2410 = vmatprep.subr.bf16.mxu0 0
        %2411 = vmatpush1.bf16.msra.mxu0 %v2356
        %2412 = vmatprep.subr.bf16.mxu0 0
        %2413 = vmatpush1.bf16.msra.mxu0 %v2357
        %2414 = vmatprep.subr.bf16.mxu0 0
        %2415 = vmatpush1.bf16.msra.mxu0 %v2358
        %2416 = vmatprep.subr.bf16.mxu0 0
        %2417 = vmatpush1.bf16.msra.mxu0 %v2359
        %2418 = vmatprep.subr.bf16.mxu0 0
        %2419 = vmatpush1.bf16.msra.mxu0 %v2360
        %2420 = vmatprep.subr.bf16.mxu0 0
        %2421 = vmatpush1.bf16.msra.mxu0 %v2361
        %2422 = vmatprep.subr.bf16.mxu0 0
        %2423 = vmatpush1.bf16.msra.mxu0 %v2362
        %2424 = vmatprep.subr.bf16.mxu0 0
        %2425 = vmatpush1.bf16.msra.mxu0 %v2363
        %2426 = vmatprep.subr.bf16.mxu0 0
        %2427 = vmatpush1.bf16.msra.mxu0 %v2364
        %2428 = vmatprep.subr.bf16.mxu0 0
        %2429 = vmatpush1.bf16.msra.mxu0 %v2365
        %2430 = vmatprep.mubr.bf16.mxu0 %v2231
        %2431 = vmatmul.mubr.bf16.gmra.mrb[0].mxu0 %v2230
        %v2432 = vpop.f32.mrb[0].mxu0
        %v2433 = vadd.f32 0.0, %v2432
        %v2434 = vpop.f32.mrb[0].mxu0
        %v2435 = vpop.f32.mrb[0].mxu0
        %v2436 = vadd.f32 0.0, %v2435
        %v2437 = vpop.f32.mrb[0].mxu0
        %2438 = vmatprep.mubr.bf16.mxu0 %v2234
        %2439 = vmatmul.mubr.bf16.gmra.mrb[0].mxu0 %v2233
        %v2440 = vpop.f32.mrb[0].mxu0
        %v2441 = vadd.f32 0.0, %v2440
        %v2442 = vpop.f32.mrb[0].mxu0
        %v2443 = vpop.f32.mrb[0].mxu0
        %v2444 = vadd.f32 0.0, %v2443
        %v2445 = vpop.f32.mrb[0].mxu0
        %2446 = vmatprep.mubr.bf16.mxu0 %v2237
        %2447 = vmatmul.mubr.bf16.gmra.mrb[0].mxu0 %v2236
        %v2448 = vpop.f32.mrb[0].mxu0
        %v2449 = vadd.f32 0.0, %v2448
        %v2450 = vpop.f32.mrb[0].mxu0
        %v2451 = vpop.f32.mrb[0].mxu0
        %v2452 = vadd.f32 0.0, %v2451
        %v2453 = vpop.f32.mrb[0].mxu0
        %2454 = vmatprep.mubr.bf16.mxu0 %v2240
        %2455 = vmatmul.mubr.bf16.gmra.mrb[0].mxu0 %v2239
        %v2456 = vpop.f32.mrb[0].mxu0
        %v2457 = vadd.f32 0.0, %v2456
        %v2458 = vpop.f32.mrb[0].mxu0
        %v2459 = vpop.f32.mrb[0].mxu0
        %v2460 = vadd.f32 0.0, %v2459
        %v2461 = vpop.f32.mrb[0].mxu0
        %2462 = vdwg.mxu0
        %2463 = vmatprep.subr.bf16.mxu0 0
        %2464 = vmatpush1.bf16.msra.mxu0 %v2366
        %2465 = vmatprep.subr.bf16.mxu0 0
        %2466 = vmatpush1.bf16.msra.mxu0 %v2367
        %2467 = vmatprep.subr.bf16.mxu0 0
        %2468 = vmatpush1.bf16.msra.mxu0 0
        %2469 = vmatprep.subr.bf16.mxu0 0
        %2470 = vmatpush1.bf16.msra.mxu0 0
        %2471 = vmatprep.subr.bf16.mxu0 0
        %2472 = vmatpush1.bf16.msra.mxu0 0
        %2473 = vmatprep.subr.bf16.mxu0 0
        %2474 = vmatpush1.bf16.msra.mxu0 0
        %2475 = vmatprep.subr.bf16.mxu0 0
        %2476 = vmatpush1.bf16.msra.mxu0 0
        %2477 = vmatprep.subr.bf16.mxu0 0
        %2478 = vmatpush1.bf16.msra.mxu0 0
        %2479 = vmatprep.subr.bf16.mxu0 0
        %2480 = vmatpush1.bf16.msra.mxu0 0
        %2481 = vmatprep.subr.bf16.mxu0 0
        %2482 = vmatpush1.bf16.msra.mxu0 0
        %2483 = vmatprep.subr.bf16.mxu0 0
        %2484 = vmatpush1.bf16.msra.mxu0 0
        %2485 = vmatprep.subr.bf16.mxu0 0
        %2486 = vmatpush1.bf16.msra.mxu0 0
        %2487 = vmatprep.subr.bf16.mxu0 0
        %2488 = vmatpush1.bf16.msra.mxu0 0
        %2489 = vmatprep.subr.bf16.mxu0 0
        %2490 = vmatpush1.bf16.msra.mxu0 0
        %2491 = vmatprep.subr.bf16.mxu0 0
        %2492 = vmatpush1.bf16.msra.mxu0 0
        %2493 = vmatprep.subr.bf16.mxu0 0
        %2494 = vmatpush1.bf16.msra.mxu0 0
        %2495 = vmatprep.mubr.bf16.mxu0 0
        %2496 = vmatmul.mubr.bf16.gmra.mrb[0].mxu0 %v2387
        %v2497 = vpop.f32.mrb[0].mxu0
        %v2498 = vadd.f32 %v2433, %v2497
        %v2499 = vpop.f32.mrb[0].mxu0
        %v2500 = vpop.f32.mrb[0].mxu0
        %v2501 = vadd.f32 %v2436, %v2500
        %v2502 = vpop.f32.mrb[0].mxu0
        %2503 = vmatprep.mubr.bf16.mxu0 0
        %2504 = vmatmul.mubr.bf16.gmra.mrb[0].mxu0 %v2390
        %v2505 = vpop.f32.mrb[0].mxu0
        %v2506 = vadd.f32 %v2441, %v2505
        %v2507 = vpop.f32.mrb[0].mxu0
        %v2508 = vpop.f32.mrb[0].mxu0
        %v2509 = vadd.f32 %v2444, %v2508
        %v2510 = vpop.f32.mrb[0].mxu0
        %2511 = vmatprep.mubr.bf16.mxu0 0
        %2512 = vmatmul.mubr.bf16.gmra.mrb[0].mxu0 %v2393
        %v2513 = vpop.f32.mrb[0].mxu0
        %v2514 = vadd.f32 %v2449, %v2513
        %v2515 = vpop.f32.mrb[0].mxu0
        %v2516 = vpop.f32.mrb[0].mxu0
        %v2517 = vadd.f32 %v2452, %v2516
        %v2518 = vpop.f32.mrb[0].mxu0
        %2519 = vmatprep.mubr.bf16.mxu0 0
        %2520 = vmatmul.mubr.bf16.gmra.mrb[0].mxu0 %v2396
        %v2521 = vpop.f32.mrb[0].mxu0
        %v2522 = vadd.f32 %v2457, %v2521
        %v2523 = vpop.f32.mrb[0].mxu0
        %v2524 = vpop.f32.mrb[0].mxu0
        %v2525 = vadd.f32 %v2460, %v2524
        %v2526 = vpop.f32.mrb[0].mxu0
        %2527 = vdwg.mxu0
        %v2528 = vld [vmem:[%s8] sm:$0x1]
        %v2530 = vlaneseq
        %v2531 = vshrl.u32 %v2530, 7
        %v2532 = vsub.s32 0, %v2531
        %v2533 = vrot.slane %v2528, %v2532
        %v2535 = vmul.f32 %v2498, %v2533
        %v2536 = vmul.f32 %v2501, %v2533
        %v2537 = vmul.f32 %v2506, %v2533
        %v2538 = vmul.f32 %v2509, %v2533
        %v2539 = vmul.f32 %v2514, %v2533
        %v2540 = vmul.f32 %v2517, %v2533
        %v2541 = vmul.f32 %v2522, %v2533
        %v2542 = vmul.f32 %v2525, %v2533
        %v2543 = vld [vmem:[%s9] sm:$0x1]
        %v2545 = vlaneseq
        %v2546 = vshrl.u32 %v2545, 7
        %v2547 = vsub.s32 0, %v2546
        %v2548 = vrot.slane %v2543, %v2547
        %v2550 = vadd.f32 %v2535, %v2548
        %v2551 = vadd.f32 %v2536, %v2548
        %v2552 = vadd.f32 %v2537, %v2548
        %v2553 = vadd.f32 %v2538, %v2548
        %v2554 = vadd.f32 %v2539, %v2548
        %v2555 = vadd.f32 %v2540, %v2548
        %v2556 = vadd.f32 %v2541, %v2548
        %v2557 = vadd.f32 %v2542, %v2548
        %v2558 = vmax.f32 %v2550, 0.0
        %v2559 = vmax.f32 %v2551, 0.0
        %v2560 = vmax.f32 %v2552, 0.0
        %v2561 = vmax.f32 %v2553, 0.0
        %v2562 = vmax.f32 %v2554, 0.0
        %v2563 = vmax.f32 %v2555, 0.0
        %v2564 = vmax.f32 %v2556, 0.0
        %v2565 = vmax.f32 %v2557, 0.0
        %v2574 = vrot.slane %v2558, 7
        %v2575 = vrot.slane %v2559, 7
        %v2576 = vrot.slane %v2560, 7
        %v2577 = vrot.slane %v2561, 7
        %v2578 = vrot.slane %v2562, 7
        %v2579 = vrot.slane %v2563, 7
        %v2580 = vrot.slane %v2564, 7
        %v2581 = vrot.slane %v2565, 7
        %vm2590 = vcmask 1040384
        %v2591 = vsel %vm2590, 0.0, %v2574
        %v2592 = vsel %vm2590, 0.0, %v2575
        %v2593 = vsel %vm2590, 0.0, %v2576
        %v2594 = vsel %vm2590, 0.0, %v2577
        %v2595 = vsel %vm2590, 0.0, %v2578
        %v2596 = vsel %vm2590, 0.0, %v2579
        %v2597 = vsel %vm2590, 0.0, %v2580
        %v2598 = vsel %vm2590, 0.0, %v2581
        %v2599 = vsel %vm2590, %v2574, 0.0
        %v2600 = vsel %vm2590, %v2575, 0.0
        %v2601 = vsel %vm2590, %v2576, 0.0
        %v2602 = vsel %vm2590, %v2577, 0.0
        %v2603 = vsel %vm2590, %v2578, 0.0
        %v2604 = vsel %vm2590, %v2579, 0.0
        %v2605 = vsel %vm2590, %v2580, 0.0
        %v2606 = vsel %vm2590, %v2581, 0.0
        %s2607 = scalar_lea.vmem [#allocation4], 16
        %vm2608 = vcmask 523264
        %2609 = vst.msk [vmem:[%s2607] sm:$0xff] %vm2608, %v2591
        %vm2610 = vcmask 517120
        %2611 = vst.msk [vmem:[%s2607 + $0x8] sm:$0x3] %vm2610, %v2599
        %2612 = vst.msk [vmem:[%s2607 + $0x10] sm:$0xff] %vm2608, %v2592
        %2613 = vst.msk [vmem:[%s2607 + $0x18] sm:$0x3] %vm2610, %v2600
        %2614 = vst.msk [vmem:[%s2607 + $0x20] sm:$0xff] %vm2608, %v2593
        %2615 = vst.msk [vmem:[%s2607 + $0x28] sm:$0x3] %vm2610, %v2601
        %2616 = vst.msk [vmem:[%s2607 + $0x30] sm:$0xff] %vm2608, %v2594
        %2617 = vst.msk [vmem:[%s2607 + $0x38] sm:$0x3] %vm2610, %v2602
        %2618 = vst.msk [vmem:[%s2607 + $0x40] sm:$0xff] %vm2608, %v2595
        %2619 = vst.msk [vmem:[%s2607 + $0x48] sm:$0x3] %vm2610, %v2603
        %2620 = vst.msk [vmem:[%s2607 + $0x50] sm:$0xff] %vm2608, %v2596
        %2621 = vst.msk [vmem:[%s2607 + $0x58] sm:$0x3] %vm2610, %v2604
        %2622 = vst.msk [vmem:[%s2607 + $0x60] sm:$0xff] %vm2608, %v2597
        %2623 = vst.msk [vmem:[%s2607 + $0x68] sm:$0x3] %vm2610, %v2605
        %2624 = vst.msk [vmem:[%s2607 + $0x70] sm:$0xff] %vm2608, %v2598
        %2625 = vst.msk [vmem:[%s2607 + $0x78] sm:$0x3] %vm2610, %v2606
        %2626 = vst.msk [vmem:[#allocation4] sm:$0xff] %vm2608, 0.0
        %2627 = vst.msk [vmem:[#allocation4 + $0x8] sm:$0x3] %vm2610, 0.0
        %s2628 = scalar_lea.vmem [#allocation4], 144
        %2629 = vst.msk [vmem:[%s2628] sm:$0xff] %vm2608, 0.0
        %2630 = vst.msk [vmem:[%s2628 + $0x8] sm:$0x3] %vm2610, 0.0
        %v2631 = vld [vmem:[#allocation4] ss:$2 sm:$0xf]
        %s2632 = scalar_lea.vmem [#allocation4], 16
        %v2633 = vld [vmem:[%s2632] ss:$2 sm:$0xf]
        %s2634 = scalar_lea.vmem [#allocation4], 32
        %v2635 = vld [vmem:[%s2634] ss:$2 sm:$0xf]
        %s2636 = scalar_lea.vmem [#allocation4], 48
        %v2637 = vld [vmem:[%s2636] ss:$2 sm:$0xf]
        %s2638 = scalar_lea.vmem [#allocation4], 64
        %v2639 = vld [vmem:[%s2638] ss:$2 sm:$0xf]
        %s2640 = scalar_lea.vmem [#allocation4], 80
        %v2641 = vld [vmem:[%s2640] ss:$2 sm:$0xf]
        %s2642 = scalar_lea.vmem [#allocation4], 96
        %v2643 = vld [vmem:[%s2642] ss:$2 sm:$0xf]
        %s2644 = scalar_lea.vmem [#allocation4], 112
        %v2645 = vld [vmem:[%s2644] ss:$2 sm:$0xf]
        %s2646 = scalar_lea.vmem [#allocation4], 128
        %v2647 = vld [vmem:[%s2646] ss:$2 sm:$0xf]
        %s2648 = scalar_lea.vmem [#allocation4], 1
        %v2649 = vld [vmem:[%s2648] ss:$2 sm:$0xf]
        %s2650 = scalar_lea.vmem [#allocation4], 17
        %v2651 = vld [vmem:[%s2650] ss:$2 sm:$0xf]
        %s2652 = scalar_lea.vmem [#allocation4], 33
        %v2653 = vld [vmem:[%s2652] ss:$2 sm:$0xf]
        %s2654 = scalar_lea.vmem [#allocation4], 49
        %v2655 = vld [vmem:[%s2654] ss:$2 sm:$0xf]
        %s2656 = scalar_lea.vmem [#allocation4], 65
        %v2657 = vld [vmem:[%s2656] ss:$2 sm:$0xf]
        %s2658 = scalar_lea.vmem [#allocation4], 81
        %v2659 = vld [vmem:[%s2658] ss:$2 sm:$0xf]
        %s2660 = scalar_lea.vmem [#allocation4], 97
        %v2661 = vld [vmem:[%s2660] ss:$2 sm:$0xf]
        %s2662 = scalar_lea.vmem [#allocation4], 113
        %v2663 = vld [vmem:[%s2662] ss:$2 sm:$0xf]
        %s2664 = scalar_lea.vmem [#allocation4], 129
        %v2665 = vld [vmem:[%s2664] ss:$2 sm:$0xf]
        %s2666 = scalar_lea.vmem [#allocation4], 2
        %v2667 = vld [vmem:[%s2666] ss:$2 sm:$0xf]
        %s2668 = scalar_lea.vmem [#allocation4], 18
        %v2669 = vld [vmem:[%s2668] ss:$2 sm:$0xf]
        %s2670 = scalar_lea.vmem [#allocation4], 34
        %v2671 = vld [vmem:[%s2670] ss:$2 sm:$0xf]
        %s2672 = scalar_lea.vmem [#allocation4], 50
        %v2673 = vld [vmem:[%s2672] ss:$2 sm:$0xf]
        %s2674 = scalar_lea.vmem [#allocation4], 66
        %v2675 = vld [vmem:[%s2674] ss:$2 sm:$0xf]
        %s2676 = scalar_lea.vmem [#allocation4], 82
        %v2677 = vld [vmem:[%s2676] ss:$2 sm:$0xf]
        %s2678 = scalar_lea.vmem [#allocation4], 98
        %v2679 = vld [vmem:[%s2678] ss:$2 sm:$0xf]
        %s2680 = scalar_lea.vmem [#allocation4], 114
        %v2681 = vld [vmem:[%s2680] ss:$2 sm:$0xf]
        %s2682 = scalar_lea.vmem [#allocation4], 130
        %v2683 = vld [vmem:[%s2682] ss:$2 sm:$0xf]
        %v2684 = vmax.f32 %v2631, %v2649
        %v2685 = vmax.f32 %v2633, %v2651
        %v2686 = vmax.f32 %v2635, %v2653
        %v2687 = vmax.f32 %v2637, %v2655
        %v2688 = vmax.f32 %v2639, %v2657
        %v2689 = vmax.f32 %v2641, %v2659
        %v2690 = vmax.f32 %v2643, %v2661
        %v2691 = vmax.f32 %v2645, %v2663
        %v2692 = vmax.f32 %v2647, %v2665
        %v2693 = vmax.f32 %v2684, %v2667
        %v2694 = vmax.f32 %v2685, %v2669
        %v2695 = vmax.f32 %v2686, %v2671
        %v2696 = vmax.f32 %v2687, %v2673
        %v2697 = vmax.f32 %v2688, %v2675
        %v2698 = vmax.f32 %v2689, %v2677
        %v2699 = vmax.f32 %v2690, %v2679
        %v2700 = vmax.f32 %v2691, %v2681
        %v2701 = vmax.f32 %v2692, %v2683
        %v2702 = vmax.f32 %v2693, %v2694
        %v2703 = vmax.f32 %v2695, %v2696
        %v2704 = vmax.f32 %v2697, %v2698
        %v2705 = vmax.f32 %v2699, %v2700
        %v2706 = vmax.f32 %v2702, %v2695
        %v2707 = vmax.f32 %v2703, %v2697
        %v2708 = vmax.f32 %v2704, %v2699
        %v2709 = vmax.f32 %v2705, %v2701
        %vm2710 = vcmask 519168
        %2711 = vst.msk [vmem:[%s352] sm:$0xf] %vm2710, %v2706
        %2712 = vst.msk [vmem:[%s352 + $0x4] sm:$0xf] %vm2710, %v2707
        %2713 = vst.msk [vmem:[%s352 + $0x8] sm:$0xf] %vm2710, %v2708
        %2714 = vst.msk [vmem:[%s352 + $0xc] sm:$0xf] %vm2710, %v2709
        %s2715 = sand.u32 %s247, 1
        %s2716 = scalar_lea.sflag [#allocation7], %s2715
        %s2717 = sand.u32 %s247, 1
        %s2718 = smul.addr %s2717, 16
        %s2719 = scalar_lea.vmem [#allocation6], %s2718
        // Predicated region
        $region61: #{front_forward.1} parent=59 // pred_check
          %p2720 = pneg %p257
        $region62: #{front_forward.1} parent=59 // pred_check_branch
          %2722 = sbr.rel (%p2720) target = $region64
        $region63: #{front_forward.1} parent=59 // pred_region
          %s2724 = ssub.s32 256, 256
          %2725 = vsyncadd %s2716, %s2724
          %s2726 = smul.addr %s24, 4
          %s2727 = smul.addr %s2726, 64
          %s2728 = scalar_lea.hbm %s10, %s2727
          %s2729 = sshll.u32 %s2719, 4
          %s2730 = int_to_ptr.vmem [resolvable:$true] %s2729
          %2735 = dma.vmem_to_hbm [thread:$0]  %s2730, 256, %s2728, %s2716, 64, 64, 4
        $region64: #{front_forward.1} parent=59 // pred_fallthru
          _
      $region60: #{front_forward.1} parent=5 // pred_fallthru
        _
      %p2736 = scmp.le.s32.totalorder 2, %s19
      // Predicated region
      $region65: #{front_forward.1} parent=5 // pred_check
        %p2737 = pneg %p2736
      $region66: #{front_forward.1} parent=5 // pred_check_branch
        %2739 = sbr.rel (%p2737) target = $region68
      $region67: #{front_forward.1} parent=5 // pred_region
        %s2740 = ssub.s32 %s19, 2
        // Predicated region
        $region69: #{front_forward.1} parent=67 // pred_check
          %p2741 = pneg %p263
        $region70: #{front_forward.1} parent=67 // pred_check_branch
          %2743 = sbr.rel (%p2741) target = $region72
        $region71: #{front_forward.1} parent=67 // pred_region
          %s2744 = sand.u32 %s248, 1
          %s2745 = scalar_lea.sflag [#allocation7], %s2744
          %s2746 = sand.u32 %s248, 1
          %s2747 = smul.addr %s2746, 16
          %s2748 = scalar_lea.vmem [#allocation6], %s2747
          %2749 = dma.done %s2745, 256
        $region72: #{front_forward.1} parent=67 // pred_fallthru
          _
      $region68: #{front_forward.1} parent=5 // pred_fallthru
        _
    $region6: #{front_forward.1} parent=1 // loop_footer
      %s23 = sadd.s32 1, %s19
    $region7: #{front_forward.1} parent=1 // loop_footer_branch
      %18 = sbr.rel target = $region3
    $region8: #{front_forward.1} parent=1 // loop_exit
      _
    %2750 = vsyncpa [#allocation7], 1
    %s2751 = scalar_lea.sflag [#allocation7], 1
    %2752 = vsyncpa %s2751, 1

</llo_original>
